<compile_context>
chip_gen: v5e
topology: v5e:2x2
jax: 0.10.0
libtpu: 0.0.40
codegen_flags: <defaults>
</compile_context>

<pallas_src>
import functools

import jax
import jax.numpy as jnp
from jax import lax
from jax.experimental import pallas as pl
from jax.experimental.pallas import tpu as pltpu


_BN_EPS_CV = 1e-3     # ultralytics Conv BN eps (consistent with the reference below)
_BN_EPS_INNER = 1e-5  # plain nn.BatchNorm2d default


# ------------------------- in-kernel helper math ---------------------------

def _sigmoid(v):
    # Stable sigmoid on the EUP tanh slot; no exp overflow for large |v|.
    return 0.5 * (jnp.tanh(0.5 * v) + 1.0)


def _silu(v):
    return v * _sigmoid(v)


def _hardswish(v):
    return v * jnp.clip(v + 3.0, 0.0, 6.0) * (1.0 / 6.0)


def _channel_mix(w, x, bias=None):
    """out[o, :] = sum_i w[o, i] * x[i, :] (+ bias[o, 0]).

    VPU broadcast-accumulate over the channel dim.  With Cin = 4..12 a jnp.dot
    would drive the MXU with K=4 and lane-sparse operands; keeping the lane axis
    on H*W (a multiple of 128) keeps everything dense on the VPU.
    """
    co, ci = w.shape
    acc = w[:, 0:1] * x[0:1, :]
    if bias is not None:
        acc = acc + bias
    for k in range(1, ci):
        acc = acc + w[:, k:k + 1] * x[k:k + 1, :]
    return acc


def _depthwise3x3(t, k9, mask_l, mask_r, pad_ref, W, pad):
    """Depthwise 3x3, stride 1, zero padding 1, on flattened (C, H*W) rows.

    The image is staged into a zero-haloed VMEM scratch (store at a 128-lane
    aligned offset); tap (di, dj) is a static lane-offset read at di*W + dj.
    Column masks kill values that wrapped across a row boundary; the scratch's
    zero halo covers the top/bottom image rows.  No extra HBM traffic, no host pad.
    """
    c, HW = t.shape
    pad_ref[:, pad:pad + HW] = t
    acc = None
    for di in (-1, 0, 1):
        for dj in (-1, 0, 1):
            j = (di + 1) * 3 + (dj + 1)          # row-major (kh, kw) tap index
            s = di * W + dj
            tap = pad_ref[:, pad + s:pad + s + HW]
            if dj == -1:
                tap = tap * mask_l
            elif dj == 1:
                tap = tap * mask_r
            term = k9[:, j:j + 1] * tap
            acc = term if acc is None else acc + term
    return acc


# ------------------------------ fused kernel --------------------------------

def _c2f_refconv_kernel(*refs, n, c, H, W, pad):
    HW = H * W
    num_in = 4 + 3 * n + 2
    x_ref, masks_ref, w1_ref, b1_ref = refs[:4]
    m_refs = refs[4:4 + 3 * n]
    w2_ref = refs[4 + 3 * n]
    b2_ref = refs[4 + 3 * n + 1]
    o_ref = refs[num_in]
    pad_ref = refs[num_in + 1]

    x = x_ref[0]                         # (c1, H*W)  lane-dense
    mask_l = masks_ref[0:1, :]           # (1, H*W)  valid when dj = -1
    mask_r = masks_ref[1:2, :]           # (1, H*W)  valid when dj = +1

    # Zero only the halo lanes of the dw-conv scratch (the center region is fully
    # overwritten before every tap read).  Done every grid step -- NOT under
    # pl.when(pid == 0) -- so it stays correct when the "parallel" batch axis is
    # sharded across cores and a core never sees program_id 0.
    zero_halo = jnp.zeros((c, pad), jnp.float32)
    pad_ref[:, :pad] = zero_halo
    pad_ref[:, pad + HW:] = zero_halo

    # cv1: 1x1 conv + folded BN + SiLU, then chunk(2) along channels.
    y = _silu(_channel_mix(w1_ref[...], x, b1_ref[...]))     # (2c, H*W)
    branches = [y[:c, :], y[c:2 * c, :]]
    cur = branches[1]

    for i in range(n):
        mats, vecs, kdw = m_refs[3 * i:3 * i + 3]
        wp1, em, wp2 = mats[0], mats[1], mats[2]              # (c, c) each
        bp1 = vecs[:, 0:1]
        s2 = vecs[:, 1:2]
        bb2 = vecs[:, 2:3]
        bp2 = vecs[:, 3:4]
        # pw1: 1x1 conv + BN + Hardswish
        t = _hardswish(_channel_mix(wp1, cur, bp1))
        # RefConv depthwise 3x3 (effective kernel built in host glue) + BN affine
        td = _depthwise3x3(t, kdw[...], mask_l, mask_r, pad_ref, W, pad)
        td = td * s2 + bb2
        # ECA: global avg pool -> Conv1d(k=3) over channels (tridiag matrix) -> sigmoid
        pooled = jnp.sum(td, axis=1, keepdims=True) * (1.0 / HW)     # (c, 1)
        gate = _sigmoid(_channel_mix(em, pooled))                    # (c, 1)
        # Hardswish AFTER the attention gate (matches the nn.Sequential order),
        # then pw2: 1x1 conv + BN (no activation, no shortcut for this config).
        cur = _channel_mix(wp2, _hardswish(td * gate), bp2)
        branches.append(cur)

    # cv2: accumulate per-branch partial 1x1 convs (no concat round trip) + SiLU.
    acc = None
    for i, br in enumerate(branches):
        part = _channel_mix(w2_ref[i], br)
        acc = part if acc is None else acc + part
    o_ref[0] = _silu(acc + b2_ref[...])                      # lane-dense store


# --------------------------- weight prep (glue) ------------------------------

def _fold_bn_pointwise(w_oi11, bn, eps):
    """Fold BatchNorm into a 1x1 conv: (Cout, Cin) weight, (Cout, 1) bias."""
    scale = bn["gamma"] / jnp.sqrt(bn["var"] + eps)
    bias = bn["beta"] - bn["mean"] * scale
    w = w_oi11[:, :, 0, 0] * scale[:, None]
    return w.astype(jnp.float32), bias.reshape(-1, 1).astype(jnp.float32)


def _bn_affine(bn, eps):
    scale = bn["gamma"] / jnp.sqrt(bn["var"] + eps)
    bias = bn["beta"] - bn["mean"] * scale
    return scale.reshape(-1, 1).astype(jnp.float32), bias.reshape(-1, 1).astype(jnp.float32)


def _refconv_effective_kernel(ref_weight, convmap_w):
    """RefConv: effective depthwise kernel = weight + convmap(weight) -> (C, 9)."""
    c = ref_weight.shape[0]
    ow = ref_weight.reshape(1, c, 3, 3)
    cm = lax.conv_general_dilated(
        ow, convmap_w, window_strides=(1, 1), padding=((1, 1), (1, 1)),
        dimension_numbers=("NCHW", "OIHW", "NCHW"))
    dk = ref_weight + cm.reshape(c, 1, 3, 3)
    return dk[:, 0].reshape(c, 9).astype(jnp.float32)


def _eca_matrix(eca_w, c):
    """3-tap Conv1d (zero-padded) over channels expressed as a (c, c) tridiagonal matrix."""
    idx = jnp.arange(c)
    d = idx[None, :] - idx[:, None] + 1
    return jnp.where((d >= 0) & (d <= 2), eca_w[jnp.clip(d, 0, 2)], 0.0).astype(jnp.float32)


def make_params(key, c1=4, c2=8, n=1, e=0.5):
    c = int(c2 * e)
    keys = iter(jax.random.split(key, 128))

    def nrm(shape, s=0.2):
        return jax.random.normal(next(keys), shape, jnp.float32) * s

    def bn(ch):
        return dict(
            gamma=1.0 + 0.1 * jax.random.normal(next(keys), (ch,), jnp.float32),
            beta=0.05 * jax.random.normal(next(keys), (ch,), jnp.float32),
            mean=0.05 * jax.random.normal(next(keys), (ch,), jnp.float32),
            var=0.5 + jax.random.uniform(next(keys), (ch,), jnp.float32),
        )

    p = dict(c=c)
    p["cv1_w"] = nrm((2 * c, c1, 1, 1))            # ultralytics Conv(c1, 2c, 1, 1)
    p["cv1_bn"] = bn(2 * c)
    p["cv2_w"] = nrm((c2, (2 + n) * c, 1, 1))      # ultralytics Conv((2+n)c, c2, 1)
    p["cv2_bn"] = bn(c2)
    mb = []
    for _ in range(n):                              # MobileBottleneck(c, c, 3, 1, eca, Hardswish, e=1.0)
        mb.append(dict(
            pw1_w=nrm((c, c, 1, 1)), pw1_bn=bn(c),
            ref_weight=nrm((c, 1, 3, 3)),           # RefConv buffer (random instead of zeros -> nontrivial path)
            convmap_w=nrm((c, c, 3, 3)),            # RefConv convmap (groups = c*c//c**2 = 1)
            bn2=bn(c),
            eca_w=nrm((3,)),                        # eca Conv1d(1, 1, 3) weight
            pw2_w=nrm((c, c, 1, 1)), pw2_bn=bn(c),
        ))
    p["m"] = mb
    return p


# --------------------------------- forward -----------------------------------

def c2f_refconv_forward(params, x_nchw):
    N, c1_in, H, W = x_nchw.shape
    HW = H * W
    c = params["c"]
    n_b = len(params["m"])
    c2_out = params["cv2_w"].shape[0]

    # NCHW is already channel-major: (N, C, H*W) is a pure reshape, no transpose.
    x = x_nchw.reshape(N, c1_in, HW).astype(jnp.float32)

    # Column-boundary masks for the depthwise taps, packed into one tiny input.
    col = jnp.arange(HW) % W
    masks = jnp.stack([(col >= 1), (col <= W - 2)]).astype(jnp.float32)   # (2, HW)

    # Halo size for the depthwise scratch (aligned so the center store is unmasked).
    pad_lanes = ((W + 1 + 127) // 128) * 128

    # --- weight-only prep (BN folding, RefConv convmap, ECA tridiag) ---
    w_cv1, b_cv1 = _fold_bn_pointwise(params["cv1_w"], params["cv1_bn"], _BN_EPS_CV)

    inputs = [x, masks, w_cv1, b_cv1]
    in_specs = [
        pl.BlockSpec((1, c1_in, HW), lambda b: (b, 0, 0)),
        pl.BlockSpec((2, HW), lambda b: (0, 0)),
        pl.BlockSpec((2 * c, c1_in), lambda b: (0, 0)),
        pl.BlockSpec((2 * c, 1), lambda b: (0, 0)),
    ]
    for mp in params["m"]:
        wp1, bp1 = _fold_bn_pointwise(mp["pw1_w"], mp["pw1_bn"], _BN_EPS_INNER)
        kdw = _refconv_effective_kernel(mp["ref_weight"], mp["convmap_w"])   # (c, 9)
        s2, bb2 = _bn_affine(mp["bn2"], _BN_EPS_INNER)                       # (c,1) x2
        em = _eca_matrix(mp["eca_w"], c)                                     # (c, c)
        wp2, bp2 = _fold_bn_pointwise(mp["pw2_w"], mp["pw2_bn"], _BN_EPS_INNER)
        mats = jnp.stack([wp1, em, wp2])                                     # (3, c, c)
        vecs = jnp.concatenate([bp1, s2, bb2, bp2], axis=1)                  # (c, 4)
        inputs += [mats, vecs, kdw]
        in_specs += [
            pl.BlockSpec((3, c, c), lambda b: (0, 0, 0)),
            pl.BlockSpec((c, 4), lambda b: (0, 0)),
            pl.BlockSpec((c, 9), lambda b: (0, 0)),
        ]

    w_cv2, b_cv2 = _fold_bn_pointwise(params["cv2_w"], params["cv2_bn"], _BN_EPS_CV)
    # Stack cv2's weight into per-branch chunks so the kernel never needs a concat.
    w_cv2s = w_cv2.reshape(c2_out, 2 + n_b, c).transpose(1, 0, 2)            # (2+n, c2, c)
    inputs += [w_cv2s, b_cv2]
    in_specs += [
        pl.BlockSpec((2 + n_b, c2_out, c), lambda b: (0, 0, 0)),
        pl.BlockSpec((c2_out, 1), lambda b: (0, 0)),
    ]

    out_flat = pl.pallas_call(
        functools.partial(_c2f_refconv_kernel, n=n_b, c=c, H=H, W=W, pad=pad_lanes),
        out_shape=jax.ShapeDtypeStruct((N, c2_out, HW), jnp.float32),
        grid=(N,),
        in_specs=in_specs,
        out_specs=pl.BlockSpec((1, c2_out, HW), lambda b: (b, 0, 0)),
        scratch_shapes=[pltpu.VMEM((c, HW + 2 * pad_lanes), jnp.float32)],
        compiler_params=pltpu.CompilerParams(
            dimension_semantics=("parallel",),
            vmem_limit_bytes=32 * 1024 * 1024,
        ),
    )(*inputs)
    return out_flat.reshape(N, c2_out, H, W)


# --------------------------- pure-JAX reference -------------------------------

def _reference_forward(params, x_nchw):
    """Straightforward XLA reference of the same forward, for validation."""
    c = params["c"]

    def bn_apply(v, bn, eps):
        s = bn["gamma"] / jnp.sqrt(bn["var"] + eps)
        b = bn["beta"] - bn["mean"] * s
        return v * s[None, :, None, None] + b[None, :, None, None]

    def conv1x1(v, w):
        return lax.conv_general_dilated(v, w, (1, 1), "VALID",
                                        dimension_numbers=("NCHW", "OIHW", "NCHW"))

    def silu(v):
        return v * jax.nn.sigmoid(v)

    def hswish(v):
        return v * jnp.clip(v + 3.0, 0.0, 6.0) / 6.0

    x = x_nchw.astype(jnp.float32)
    y = silu(bn_apply(conv1x1(x, params["cv1_w"]), params["cv1_bn"], _BN_EPS_CV))
    y0, y1 = y[:, :c], y[:, c:]
    outs = [y0, y1]
    cur = y1
    for mp in params["m"]:
        t = hswish(bn_apply(conv1x1(cur, mp["pw1_w"]), mp["pw1_bn"], _BN_EPS_INNER))
        ow = mp["ref_weight"].reshape(1, c, 3, 3)
        cm = lax.conv_general_dilated(ow, mp["convmap_w"], (1, 1), ((1, 1), (1, 1)),
                                      dimension_numbers=("NCHW", "OIHW", "NCHW"))
        dk = mp["ref_weight"] + cm.reshape(c, 1, 3, 3)
        td = lax.conv_general_dilated(t, dk, (1, 1), ((1, 1), (1, 1)),
                                      dimension_numbers=("NCHW", "OIHW", "NCHW"),
                                      feature_group_count=c)
        td = bn_apply(td, mp["bn2"], _BN_EPS_INNER)
        pooled = jnp.mean(td, axis=(2, 3))                                   # (N, c)
        pp = jnp.pad(pooled, ((0, 0), (1, 1)))
        ew = mp["eca_w"]
        g = jax.nn.sigmoid(ew[0] * pp[:, :-2] + ew[1] * pp[:, 1:-1] + ew[2] * pp[:, 2:])
        cur = bn_apply(conv1x1(hswish(td * g[:, :, None, None]), mp["pw2_w"]),
                       mp["pw2_bn"], _BN_EPS_INNER)
        outs.append(cur)
    cat = jnp.concatenate(outs, axis=1)
    return silu(bn_apply(conv1x1(cat, params["cv2_w"]), params["cv2_bn"], _BN_EPS_CV))


# ----------------------------------- main -------------------------------------

if __name__ == "__main__":
    key = jax.random.PRNGKey(0)
    pkey, xkey = jax.random.split(key)

    c1, c2 = 4, 8
    params = make_params(pkey, c1=c1, c2=c2, n=1, e=0.5)
    x = jax.random.normal(xkey, (2, c1, 16, 16), jnp.float32)   # NCHW like PyTorch

    fwd = jax.jit(lambda inp: c2f_refconv_forward(params, inp))
    out = jax.block_until_ready(fwd(x))

    assert out.shape == (2, c2, 16, 16), out.shape
    assert bool(jnp.all(jnp.isfinite(out)))

    # Validate the fused Pallas kernel against the pure-JAX (XLA) reference.
    ref = jax.block_until_ready(jax.jit(lambda inp: _reference_forward(params, inp))(x))
    assert bool(jnp.allclose(out, ref, rtol=1e-3, atol=1e-3)), \
        float(jnp.max(jnp.abs(out - ref)))

    print("KERNEL_OK")
</pallas_src>

<mosaic_0001>
module attributes {stable_mosaic.version = 11 : i64} {
  func.func @_c2f_refconv_kernel(%arg0: i32, %arg1: memref<1x4x256xf32, #tpu.memory_space<vmem>>, %arg2: memref<2x256xf32, #tpu.memory_space<vmem>>, %arg3: memref<8x4xf32, #tpu.memory_space<vmem>>, %arg4: memref<8x1xf32, #tpu.memory_space<vmem>>, %arg5: memref<3x4x4xf32, #tpu.memory_space<vmem>>, %arg6: memref<4x4xf32, #tpu.memory_space<vmem>>, %arg7: memref<4x9xf32, #tpu.memory_space<vmem>>, %arg8: memref<3x8x4xf32, #tpu.memory_space<vmem>>, %arg9: memref<8x1xf32, #tpu.memory_space<vmem>>, %arg10: memref<1x8x256xf32, #tpu.memory_space<vmem>>, %arg11: memref<4x512xf32, #tpu.memory_space<vmem>>) attributes {dimension_semantics = [#tpu.dimension_semantics<parallel>], iteration_bounds = array<i64: 2>, scalar_prefetch = 0 : i64, scratch_operands = 1 : i64, tpu.core_type = #tpu.core_type<tc>, window_params = [{transform_indices = @transform_0, window_bounds = array<i64: 1, 4, 256>}, {pipeline_mode = #tpu.pipeline_mode<synchronous>, transform_indices = @transform_1, window_bounds = array<i64: 2, 256>}, {pipeline_mode = #tpu.pipeline_mode<synchronous>, transform_indices = @transform_2, window_bounds = array<i64: 8, 4>}, {pipeline_mode = #tpu.pipeline_mode<synchronous>, transform_indices = @transform_3, window_bounds = array<i64: 8, 1>}, {pipeline_mode = #tpu.pipeline_mode<synchronous>, transform_indices = @transform_4, window_bounds = array<i64: 3, 4, 4>}, {pipeline_mode = #tpu.pipeline_mode<synchronous>, transform_indices = @transform_5, window_bounds = array<i64: 4, 4>}, {pipeline_mode = #tpu.pipeline_mode<synchronous>, transform_indices = @transform_6, window_bounds = array<i64: 4, 9>}, {pipeline_mode = #tpu.pipeline_mode<synchronous>, transform_indices = @transform_7, window_bounds = array<i64: 3, 8, 4>}, {pipeline_mode = #tpu.pipeline_mode<synchronous>, transform_indices = @transform_8, window_bounds = array<i64: 8, 1>}, {transform_indices = @transform_9, window_bounds = array<i64: 1, 8, 256>}]} {
    %c0 = arith.constant 0 : index
    %c0_0 = arith.constant 0 : index
    %c0_1 = arith.constant 0 : index
    %0 = vector.load %arg1[%c0, %c0_0, %c0_1] : memref<1x4x256xf32, #tpu.memory_space<vmem>>, vector<1x4x256xf32>
    %1 = vector.shape_cast %0 : vector<1x4x256xf32> to vector<4x256xf32>
    %c0_2 = arith.constant 0 : index
    %c0_3 = arith.constant 0 : index
    %2 = vector.load %arg2[%c0_2, %c0_3] : memref<2x256xf32, #tpu.memory_space<vmem>>, vector<1x256xf32>
    %c1 = arith.constant 1 : index
    %c0_4 = arith.constant 0 : index
    %3 = vector.load %arg2[%c1, %c0_4] : memref<2x256xf32, #tpu.memory_space<vmem>>, vector<1x256xf32>
    %cst = arith.constant 0.000000e+00 : f32
    %4 = vector.broadcast %cst : f32 to vector<4x128xf32>
    %c0_5 = arith.constant 0 : index
    %c0_6 = arith.constant 0 : index
    %5 = vector.load %arg11[%c0_5, %c0_6] : memref<4x512xf32, #tpu.memory_space<vmem>>, vector<4x128xf32>
    tpu.vector_store %arg11[%c0_5, %c0_6], %4 {strides = array<i32>} : memref<4x512xf32, #tpu.memory_space<vmem>>, vector<4x128xf32>,
    %c0_7 = arith.constant 0 : index
    %c384 = arith.constant 384 : index
    %6 = vector.load %arg11[%c0_7, %c384] : memref<4x512xf32, #tpu.memory_space<vmem>>, vector<4x128xf32>
    tpu.vector_store %arg11[%c0_7, %c384], %4 {strides = array<i32>} : memref<4x512xf32, #tpu.memory_space<vmem>>, vector<4x128xf32>,
    %c0_8 = arith.constant 0 : index
    %c0_9 = arith.constant 0 : index
    %7 = vector.load %arg3[%c0_8, %c0_9] : memref<8x4xf32, #tpu.memory_space<vmem>>, vector<8x4xf32>
    %c0_10 = arith.constant 0 : index
    %c0_11 = arith.constant 0 : index
    %8 = vector.load %arg4[%c0_10, %c0_11] : memref<8x1xf32, #tpu.memory_space<vmem>>, vector<8x1xf32>
    %9 = vector.extract_strided_slice %7 {offsets = [0, 0], sizes = [8, 1], strides = [1, 1]} : vector<8x4xf32> to vector<8x1xf32>
    %10 = vector.extract_strided_slice %1 {offsets = [0, 0], sizes = [1, 256], strides = [1, 1]} : vector<4x256xf32> to vector<1x256xf32>
    %11 = vector.broadcast %9 : vector<8x1xf32> to vector<8x256xf32>
    %12 = vector.broadcast %10 : vector<1x256xf32> to vector<8x256xf32>
    %13 = arith.mulf %11, %12 : vector<8x256xf32>
    %14 = vector.broadcast %8 : vector<8x1xf32> to vector<8x256xf32>
    %15 = arith.addf %13, %14 : vector<8x256xf32>
    %16 = vector.extract_strided_slice %7 {offsets = [0, 1], sizes = [8, 1], strides = [1, 1]} : vector<8x4xf32> to vector<8x1xf32>
    %17 = vector.extract_strided_slice %1 {offsets = [1, 0], sizes = [1, 256], strides = [1, 1]} : vector<4x256xf32> to vector<1x256xf32>
    %18 = vector.broadcast %16 : vector<8x1xf32> to vector<8x256xf32>
    %19 = vector.broadcast %17 : vector<1x256xf32> to vector<8x256xf32>
    %20 = arith.mulf %18, %19 : vector<8x256xf32>
    %21 = arith.addf %15, %20 : vector<8x256xf32>
    %22 = vector.extract_strided_slice %7 {offsets = [0, 2], sizes = [8, 1], strides = [1, 1]} : vector<8x4xf32> to vector<8x1xf32>
    %23 = vector.extract_strided_slice %1 {offsets = [2, 0], sizes = [1, 256], strides = [1, 1]} : vector<4x256xf32> to vector<1x256xf32>
    %24 = vector.broadcast %22 : vector<8x1xf32> to vector<8x256xf32>
    %25 = vector.broadcast %23 : vector<1x256xf32> to vector<8x256xf32>
    %26 = arith.mulf %24, %25 : vector<8x256xf32>
    %27 = arith.addf %21, %26 : vector<8x256xf32>
    %28 = vector.extract_strided_slice %7 {offsets = [0, 3], sizes = [8, 1], strides = [1, 1]} : vector<8x4xf32> to vector<8x1xf32>
    %29 = vector.extract_strided_slice %1 {offsets = [3, 0], sizes = [1, 256], strides = [1, 1]} : vector<4x256xf32> to vector<1x256xf32>
    %30 = vector.broadcast %28 : vector<8x1xf32> to vector<8x256xf32>
    %31 = vector.broadcast %29 : vector<1x256xf32> to vector<8x256xf32>
    %32 = arith.mulf %30, %31 : vector<8x256xf32>
    %33 = arith.addf %27, %32 : vector<8x256xf32>
    %cst_12 = arith.constant 5.000000e-01 : f32
    %34 = vector.broadcast %cst_12 : f32 to vector<8x256xf32>
    %35 = arith.mulf %34, %33 : vector<8x256xf32>
    %36 = math.tanh %35 : vector<8x256xf32>
    %cst_13 = arith.constant 1.000000e+00 : f32
    %37 = vector.broadcast %cst_13 : f32 to vector<8x256xf32>
    %38 = arith.addf %36, %37 : vector<8x256xf32>
    %cst_14 = arith.constant 5.000000e-01 : f32
    %39 = vector.broadcast %cst_14 : f32 to vector<8x256xf32>
    %40 = arith.mulf %39, %38 : vector<8x256xf32>
    %41 = arith.mulf %33, %40 : vector<8x256xf32>
    %42 = vector.extract_strided_slice %41 {offsets = [0, 0], sizes = [4, 256], strides = [1, 1]} : vector<8x256xf32> to vector<4x256xf32>
    %43 = vector.extract_strided_slice %41 {offsets = [4, 0], sizes = [4, 256], strides = [1, 1]} : vector<8x256xf32> to vector<4x256xf32>
    %c0_15 = arith.constant 0 : index
    %c0_16 = arith.constant 0 : index
    %c0_17 = arith.constant 0 : index
    %44 = vector.load %arg5[%c0_15, %c0_16, %c0_17] : memref<3x4x4xf32, #tpu.memory_space<vmem>>, vector<1x4x4xf32>
    %45 = vector.shape_cast %44 : vector<1x4x4xf32> to vector<4x4xf32>
    %c1_18 = arith.constant 1 : index
    %c0_19 = arith.constant 0 : index
    %c0_20 = arith.constant 0 : index
    %46 = vector.load %arg5[%c1_18, %c0_19, %c0_20] : memref<3x4x4xf32, #tpu.memory_space<vmem>>, vector<1x4x4xf32>
    %47 = vector.shape_cast %46 : vector<1x4x4xf32> to vector<4x4xf32>
    %c2 = arith.constant 2 : index
    %c0_21 = arith.constant 0 : index
    %c0_22 = arith.constant 0 : index
    %48 = vector.load %arg5[%c2, %c0_21, %c0_22] : memref<3x4x4xf32, #tpu.memory_space<vmem>>, vector<1x4x4xf32>
    %49 = vector.shape_cast %48 : vector<1x4x4xf32> to vector<4x4xf32>
    %c0_23 = arith.constant 0 : index
    %c0_24 = arith.constant 0 : index
    %50 = vector.load %arg6[%c0_23, %c0_24] : memref<4x4xf32, #tpu.memory_space<vmem>>, vector<4x1xf32>
    %c0_25 = arith.constant 0 : index
    %c1_26 = arith.constant 1 : index
    %51 = vector.load %arg6[%c0_25, %c1_26] : memref<4x4xf32, #tpu.memory_space<vmem>>, vector<4x1xf32>
    %c0_27 = arith.constant 0 : index
    %c2_28 = arith.constant 2 : index
    %52 = vector.load %arg6[%c0_27, %c2_28] : memref<4x4xf32, #tpu.memory_space<vmem>>, vector<4x1xf32>
    %c0_29 = arith.constant 0 : index
    %c3 = arith.constant 3 : index
    %53 = vector.load %arg6[%c0_29, %c3] : memref<4x4xf32, #tpu.memory_space<vmem>>, vector<4x1xf32>
    %54 = vector.extract_strided_slice %45 {offsets = [0, 0], sizes = [4, 1], strides = [1, 1]} : vector<4x4xf32> to vector<4x1xf32>
    %55 = vector.extract_strided_slice %43 {offsets = [0, 0], sizes = [1, 256], strides = [1, 1]} : vector<4x256xf32> to vector<1x256xf32>
    %56 = vector.broadcast %54 : vector<4x1xf32> to vector<4x256xf32>
    %57 = vector.broadcast %55 : vector<1x256xf32> to vector<4x256xf32>
    %58 = arith.mulf %56, %57 : vector<4x256xf32>
    %59 = vector.broadcast %50 : vector<4x1xf32> to vector<4x256xf32>
    %60 = arith.addf %58, %59 : vector<4x256xf32>
    %61 = vector.extract_strided_slice %45 {offsets = [0, 1], sizes = [4, 1], strides = [1, 1]} : vector<4x4xf32> to vector<4x1xf32>
    %62 = vector.extract_strided_slice %43 {offsets = [1, 0], sizes = [1, 256], strides = [1, 1]} : vector<4x256xf32> to vector<1x256xf32>
    %63 = vector.broadcast %61 : vector<4x1xf32> to vector<4x256xf32>
    %64 = vector.broadcast %62 : vector<1x256xf32> to vector<4x256xf32>
    %65 = arith.mulf %63, %64 : vector<4x256xf32>
    %66 = arith.addf %60, %65 : vector<4x256xf32>
    %67 = vector.extract_strided_slice %45 {offsets = [0, 2], sizes = [4, 1], strides = [1, 1]} : vector<4x4xf32> to vector<4x1xf32>
    %68 = vector.extract_strided_slice %43 {offsets = [2, 0], sizes = [1, 256], strides = [1, 1]} : vector<4x256xf32> to vector<1x256xf32>
    %69 = vector.broadcast %67 : vector<4x1xf32> to vector<4x256xf32>
    %70 = vector.broadcast %68 : vector<1x256xf32> to vector<4x256xf32>
    %71 = arith.mulf %69, %70 : vector<4x256xf32>
    %72 = arith.addf %66, %71 : vector<4x256xf32>
    %73 = vector.extract_strided_slice %45 {offsets = [0, 3], sizes = [4, 1], strides = [1, 1]} : vector<4x4xf32> to vector<4x1xf32>
    %74 = vector.extract_strided_slice %43 {offsets = [3, 0], sizes = [1, 256], strides = [1, 1]} : vector<4x256xf32> to vector<1x256xf32>
    %75 = vector.broadcast %73 : vector<4x1xf32> to vector<4x256xf32>
    %76 = vector.broadcast %74 : vector<1x256xf32> to vector<4x256xf32>
    %77 = arith.mulf %75, %76 : vector<4x256xf32>
    %78 = arith.addf %72, %77 : vector<4x256xf32>
    %cst_30 = arith.constant 3.000000e+00 : f32
    %79 = vector.broadcast %cst_30 : f32 to vector<4x256xf32>
    %80 = arith.addf %78, %79 : vector<4x256xf32>
    %cst_31 = arith.constant 0.000000e+00 : f32
    %cst_32 = arith.constant 6.000000e+00 : f32
    %81 = vector.broadcast %cst_31 : f32 to vector<4x256xf32>
    %82 = arith.maximumf %81, %80 : vector<4x256xf32>
    %83 = vector.broadcast %cst_32 : f32 to vector<4x256xf32>
    %84 = arith.minimumf %83, %82 : vector<4x256xf32>
    %85 = arith.mulf %78, %84 : vector<4x256xf32>
    %cst_33 = arith.constant 0.166666672 : f32
    %86 = vector.broadcast %cst_33 : f32 to vector<4x256xf32>
    %87 = arith.mulf %85, %86 : vector<4x256xf32>
    %c0_34 = arith.constant 0 : index
    %c0_35 = arith.constant 0 : index
    %88 = vector.load %arg7[%c0_34, %c0_35] : memref<4x9xf32, #tpu.memory_space<vmem>>, vector<4x9xf32>
    %c0_36 = arith.constant 0 : index
    %c128 = arith.constant 128 : index
    %89 = vector.load %arg11[%c0_36, %c128] : memref<4x512xf32, #tpu.memory_space<vmem>>, vector<4x256xf32>
    tpu.vector_store %arg11[%c0_36, %c128], %87 {strides = array<i32>} : memref<4x512xf32, #tpu.memory_space<vmem>>, vector<4x256xf32>,
    %c0_37 = arith.constant 0 : index
    %c111 = arith.constant 111 : index
    %90 = vector.load %arg11[%c0_37, %c111] : memref<4x512xf32, #tpu.memory_space<vmem>>, vector<4x256xf32>
    %91 = vector.broadcast %2 : vector<1x256xf32> to vector<4x256xf32>
    %92 = arith.mulf %90, %91 : vector<4x256xf32>
    %93 = vector.extract_strided_slice %88 {offsets = [0, 0], sizes = [4, 1], strides = [1, 1]} : vector<4x9xf32> to vector<4x1xf32>
    %94 = vector.broadcast %93 : vector<4x1xf32> to vector<4x256xf32>
    %95 = arith.mulf %94, %92 : vector<4x256xf32>
    %c0_38 = arith.constant 0 : index
    %c112 = arith.constant 112 : index
    %96 = vector.load %arg11[%c0_38, %c112] : memref<4x512xf32, #tpu.memory_space<vmem>>, vector<4x256xf32>
    %97 = vector.extract_strided_slice %88 {offsets = [0, 1], sizes = [4, 1], strides = [1, 1]} : vector<4x9xf32> to vector<4x1xf32>
    %98 = vector.broadcast %97 : vector<4x1xf32> to vector<4x256xf32>
    %99 = arith.mulf %98, %96 : vector<4x256xf32>
    %100 = arith.addf %95, %99 : vector<4x256xf32>
    %c0_39 = arith.constant 0 : index
    %c113 = arith.constant 113 : index
    %101 = vector.load %arg11[%c0_39, %c113] : memref<4x512xf32, #tpu.memory_space<vmem>>, vector<4x256xf32>
    %102 = vector.broadcast %3 : vector<1x256xf32> to vector<4x256xf32>
    %103 = arith.mulf %101, %102 : vector<4x256xf32>
    %104 = vector.extract_strided_slice %88 {offsets = [0, 2], sizes = [4, 1], strides = [1, 1]} : vector<4x9xf32> to vector<4x1xf32>
    %105 = vector.broadcast %104 : vector<4x1xf32> to vector<4x256xf32>
    %106 = arith.mulf %105, %103 : vector<4x256xf32>
    %107 = arith.addf %100, %106 : vector<4x256xf32>
    %c0_40 = arith.constant 0 : index
    %c127 = arith.constant 127 : index
    %108 = vector.load %arg11[%c0_40, %c127] : memref<4x512xf32, #tpu.memory_space<vmem>>, vector<4x256xf32>
    %109 = vector.broadcast %2 : vector<1x256xf32> to vector<4x256xf32>
    %110 = arith.mulf %108, %109 : vector<4x256xf32>
    %111 = vector.extract_strided_slice %88 {offsets = [0, 3], sizes = [4, 1], strides = [1, 1]} : vector<4x9xf32> to vector<4x1xf32>
    %112 = vector.broadcast %111 : vector<4x1xf32> to vector<4x256xf32>
    %113 = arith.mulf %112, %110 : vector<4x256xf32>
    %114 = arith.addf %107, %113 : vector<4x256xf32>
    %c0_41 = arith.constant 0 : index
    %c128_42 = arith.constant 128 : index
    %115 = vector.load %arg11[%c0_41, %c128_42] : memref<4x512xf32, #tpu.memory_space<vmem>>, vector<4x256xf32>
    %116 = vector.extract_strided_slice %88 {offsets = [0, 4], sizes = [4, 1], strides = [1, 1]} : vector<4x9xf32> to vector<4x1xf32>
    %117 = vector.broadcast %116 : vector<4x1xf32> to vector<4x256xf32>
    %118 = arith.mulf %117, %115 : vector<4x256xf32>
    %119 = arith.addf %114, %118 : vector<4x256xf32>
    %c0_43 = arith.constant 0 : index
    %c129 = arith.constant 129 : index
    %120 = vector.load %arg11[%c0_43, %c129] : memref<4x512xf32, #tpu.memory_space<vmem>>, vector<4x256xf32>
    %121 = vector.broadcast %3 : vector<1x256xf32> to vector<4x256xf32>
    %122 = arith.mulf %120, %121 : vector<4x256xf32>
    %123 = vector.extract_strided_slice %88 {offsets = [0, 5], sizes = [4, 1], strides = [1, 1]} : vector<4x9xf32> to vector<4x1xf32>
    %124 = vector.broadcast %123 : vector<4x1xf32> to vector<4x256xf32>
    %125 = arith.mulf %124, %122 : vector<4x256xf32>
    %126 = arith.addf %119, %125 : vector<4x256xf32>
    %c0_44 = arith.constant 0 : index
    %c143 = arith.constant 143 : index
    %127 = vector.load %arg11[%c0_44, %c143] : memref<4x512xf32, #tpu.memory_space<vmem>>, vector<4x256xf32>
    %128 = vector.broadcast %2 : vector<1x256xf32> to vector<4x256xf32>
    %129 = arith.mulf %127, %128 : vector<4x256xf32>
    %130 = vector.extract_strided_slice %88 {offsets = [0, 6], sizes = [4, 1], strides = [1, 1]} : vector<4x9xf32> to vector<4x1xf32>
    %131 = vector.broadcast %130 : vector<4x1xf32> to vector<4x256xf32>
    %132 = arith.mulf %131, %129 : vector<4x256xf32>
    %133 = arith.addf %126, %132 : vector<4x256xf32>
    %c0_45 = arith.constant 0 : index
    %c144 = arith.constant 144 : index
    %134 = vector.load %arg11[%c0_45, %c144] : memref<4x512xf32, #tpu.memory_space<vmem>>, vector<4x256xf32>
    %135 = vector.extract_strided_slice %88 {offsets = [0, 7], sizes = [4, 1], strides = [1, 1]} : vector<4x9xf32> to vector<4x1xf32>
    %136 = vector.broadcast %135 : vector<4x1xf32> to vector<4x256xf32>
    %137 = arith.mulf %136, %134 : vector<4x256xf32>
    %138 = arith.addf %133, %137 : vector<4x256xf32>
    %c0_46 = arith.constant 0 : index
    %c145 = arith.constant 145 : index
    %139 = vector.load %arg11[%c0_46, %c145] : memref<4x512xf32, #tpu.memory_space<vmem>>, vector<4x256xf32>
    %140 = vector.broadcast %3 : vector<1x256xf32> to vector<4x256xf32>
    %141 = arith.mulf %139, %140 : vector<4x256xf32>
    %142 = vector.extract_strided_slice %88 {offsets = [0, 8], sizes = [4, 1], strides = [1, 1]} : vector<4x9xf32> to vector<4x1xf32>
    %143 = vector.broadcast %142 : vector<4x1xf32> to vector<4x256xf32>
    %144 = arith.mulf %143, %141 : vector<4x256xf32>
    %145 = arith.addf %138, %144 : vector<4x256xf32>
    %146 = vector.broadcast %51 : vector<4x1xf32> to vector<4x256xf32>
    %147 = arith.mulf %145, %146 : vector<4x256xf32>
    %148 = vector.broadcast %52 : vector<4x1xf32> to vector<4x256xf32>
    %149 = arith.addf %147, %148 : vector<4x256xf32>
    %cst_47 = arith.constant dense<0.000000e+00> : vector<4xf32>
    %150 = vector.multi_reduction <add>, %149, %cst_47 [1] : vector<4x256xf32> to vector<4xf32>
    %151 = vector.shape_cast %150 : vector<4xf32> to vector<4x1xf32>
    %cst_48 = arith.constant 3.906250e-03 : f32
    %152 = vector.broadcast %cst_48 : f32 to vector<4x1xf32>
    %153 = arith.mulf %151, %152 : vector<4x1xf32>
    %154 = vector.extract_strided_slice %47 {offsets = [0, 0], sizes = [4, 1], strides = [1, 1]} : vector<4x4xf32> to vector<4x1xf32>
    %155 = vector.extract_strided_slice %153 {offsets = [0, 0], sizes = [1, 1], strides = [1, 1]} : vector<4x1xf32> to vector<1x1xf32>
    %156 = vector.broadcast %155 : vector<1x1xf32> to vector<4x1xf32>
    %157 = arith.mulf %154, %156 : vector<4x1xf32>
    %158 = vector.extract_strided_slice %47 {offsets = [0, 1], sizes = [4, 1], strides = [1, 1]} : vector<4x4xf32> to vector<4x1xf32>
    %159 = vector.extract_strided_slice %153 {offsets = [1, 0], sizes = [1, 1], strides = [1, 1]} : vector<4x1xf32> to vector<1x1xf32>
    %160 = vector.broadcast %159 : vector<1x1xf32> to vector<4x1xf32>
    %161 = arith.mulf %158, %160 : vector<4x1xf32>
    %162 = arith.addf %157, %161 : vector<4x1xf32>
    %163 = vector.extract_strided_slice %47 {offsets = [0, 2], sizes = [4, 1], strides = [1, 1]} : vector<4x4xf32> to vector<4x1xf32>
    %164 = vector.extract_strided_slice %153 {offsets = [2, 0], sizes = [1, 1], strides = [1, 1]} : vector<4x1xf32> to vector<1x1xf32>
    %165 = vector.broadcast %164 : vector<1x1xf32> to vector<4x1xf32>
    %166 = arith.mulf %163, %165 : vector<4x1xf32>
    %167 = arith.addf %162, %166 : vector<4x1xf32>
    %168 = vector.extract_strided_slice %47 {offsets = [0, 3], sizes = [4, 1], strides = [1, 1]} : vector<4x4xf32> to vector<4x1xf32>
    %169 = vector.extract_strided_slice %153 {offsets = [3, 0], sizes = [1, 1], strides = [1, 1]} : vector<4x1xf32> to vector<1x1xf32>
    %170 = vector.broadcast %169 : vector<1x1xf32> to vector<4x1xf32>
    %171 = arith.mulf %168, %170 : vector<4x1xf32>
    %172 = arith.addf %167, %171 : vector<4x1xf32>
    %cst_49 = arith.constant 5.000000e-01 : f32
    %173 = vector.broadcast %cst_49 : f32 to vector<4x1xf32>
    %174 = arith.mulf %173, %172 : vector<4x1xf32>
    %175 = math.tanh %174 : vector<4x1xf32>
    %cst_50 = arith.constant 1.000000e+00 : f32
    %176 = vector.broadcast %cst_50 : f32 to vector<4x1xf32>
    %177 = arith.addf %175, %176 : vector<4x1xf32>
    %cst_51 = arith.constant 5.000000e-01 : f32
    %178 = vector.broadcast %cst_51 : f32 to vector<4x1xf32>
    %179 = arith.mulf %178, %177 : vector<4x1xf32>
    %180 = vector.broadcast %179 : vector<4x1xf32> to vector<4x256xf32>
    %181 = arith.mulf %149, %180 : vector<4x256xf32>
    %cst_52 = arith.constant 3.000000e+00 : f32
    %182 = vector.broadcast %cst_52 : f32 to vector<4x256xf32>
    %183 = arith.addf %181, %182 : vector<4x256xf32>
    %cst_53 = arith.constant 0.000000e+00 : f32
    %cst_54 = arith.constant 6.000000e+00 : f32
    %184 = vector.broadcast %cst_53 : f32 to vector<4x256xf32>
    %185 = arith.maximumf %184, %183 : vector<4x256xf32>
    %186 = vector.broadcast %cst_54 : f32 to vector<4x256xf32>
    %187 = arith.minimumf %186, %185 : vector<4x256xf32>
    %188 = arith.mulf %181, %187 : vector<4x256xf32>
    %cst_55 = arith.constant 0.166666672 : f32
    %189 = vector.broadcast %cst_55 : f32 to vector<4x256xf32>
    %190 = arith.mulf %188, %189 : vector<4x256xf32>
    %191 = vector.extract_strided_slice %49 {offsets = [0, 0], sizes = [4, 1], strides = [1, 1]} : vector<4x4xf32> to vector<4x1xf32>
    %192 = vector.extract_strided_slice %190 {offsets = [0, 0], sizes = [1, 256], strides = [1, 1]} : vector<4x256xf32> to vector<1x256xf32>
    %193 = vector.broadcast %191 : vector<4x1xf32> to vector<4x256xf32>
    %194 = vector.broadcast %192 : vector<1x256xf32> to vector<4x256xf32>
    %195 = arith.mulf %193, %194 : vector<4x256xf32>
    %196 = vector.broadcast %53 : vector<4x1xf32> to vector<4x256xf32>
    %197 = arith.addf %195, %196 : vector<4x256xf32>
    %198 = vector.extract_strided_slice %49 {offsets = [0, 1], sizes = [4, 1], strides = [1, 1]} : vector<4x4xf32> to vector<4x1xf32>
    %199 = vector.extract_strided_slice %190 {offsets = [1, 0], sizes = [1, 256], strides = [1, 1]} : vector<4x256xf32> to vector<1x256xf32>
    %200 = vector.broadcast %198 : vector<4x1xf32> to vector<4x256xf32>
    %201 = vector.broadcast %199 : vector<1x256xf32> to vector<4x256xf32>
    %202 = arith.mulf %200, %201 : vector<4x256xf32>
    %203 = arith.addf %197, %202 : vector<4x256xf32>
    %204 = vector.extract_strided_slice %49 {offsets = [0, 2], sizes = [4, 1], strides = [1, 1]} : vector<4x4xf32> to vector<4x1xf32>
    %205 = vector.extract_strided_slice %190 {offsets = [2, 0], sizes = [1, 256], strides = [1, 1]} : vector<4x256xf32> to vector<1x256xf32>
    %206 = vector.broadcast %204 : vector<4x1xf32> to vector<4x256xf32>
    %207 = vector.broadcast %205 : vector<1x256xf32> to vector<4x256xf32>
    %208 = arith.mulf %206, %207 : vector<4x256xf32>
    %209 = arith.addf %203, %208 : vector<4x256xf32>
    %210 = vector.extract_strided_slice %49 {offsets = [0, 3], sizes = [4, 1], strides = [1, 1]} : vector<4x4xf32> to vector<4x1xf32>
    %211 = vector.extract_strided_slice %190 {offsets = [3, 0], sizes = [1, 256], strides = [1, 1]} : vector<4x256xf32> to vector<1x256xf32>
    %212 = vector.broadcast %210 : vector<4x1xf32> to vector<4x256xf32>
    %213 = vector.broadcast %211 : vector<1x256xf32> to vector<4x256xf32>
    %214 = arith.mulf %212, %213 : vector<4x256xf32>
    %215 = arith.addf %209, %214 : vector<4x256xf32>
    %c0_56 = arith.constant 0 : index
    %c0_57 = arith.constant 0 : index
    %c0_58 = arith.constant 0 : index
    %216 = vector.load %arg8[%c0_56, %c0_57, %c0_58] : memref<3x8x4xf32, #tpu.memory_space<vmem>>, vector<1x8x4xf32>
    %217 = vector.shape_cast %216 : vector<1x8x4xf32> to vector<8x4xf32>
    %218 = vector.extract_strided_slice %217 {offsets = [0, 0], sizes = [8, 1], strides = [1, 1]} : vector<8x4xf32> to vector<8x1xf32>
    %219 = vector.extract_strided_slice %42 {offsets = [0, 0], sizes = [1, 256], strides = [1, 1]} : vector<4x256xf32> to vector<1x256xf32>
    %220 = vector.broadcast %218 : vector<8x1xf32> to vector<8x256xf32>
    %221 = vector.broadcast %219 : vector<1x256xf32> to vector<8x256xf32>
    %222 = arith.mulf %220, %221 : vector<8x256xf32>
    %223 = vector.extract_strided_slice %217 {offsets = [0, 1], sizes = [8, 1], strides = [1, 1]} : vector<8x4xf32> to vector<8x1xf32>
    %224 = vector.extract_strided_slice %42 {offsets = [1, 0], sizes = [1, 256], strides = [1, 1]} : vector<4x256xf32> to vector<1x256xf32>
    %225 = vector.broadcast %223 : vector<8x1xf32> to vector<8x256xf32>
    %226 = vector.broadcast %224 : vector<1x256xf32> to vector<8x256xf32>
    %227 = arith.mulf %225, %226 : vector<8x256xf32>
    %228 = arith.addf %222, %227 : vector<8x256xf32>
    %229 = vector.extract_strided_slice %217 {offsets = [0, 2], sizes = [8, 1], strides = [1, 1]} : vector<8x4xf32> to vector<8x1xf32>
    %230 = vector.extract_strided_slice %42 {offsets = [2, 0], sizes = [1, 256], strides = [1, 1]} : vector<4x256xf32> to vector<1x256xf32>
    %231 = vector.broadcast %229 : vector<8x1xf32> to vector<8x256xf32>
    %232 = vector.broadcast %230 : vector<1x256xf32> to vector<8x256xf32>
    %233 = arith.mulf %231, %232 : vector<8x256xf32>
    %234 = arith.addf %228, %233 : vector<8x256xf32>
    %235 = vector.extract_strided_slice %217 {offsets = [0, 3], sizes = [8, 1], strides = [1, 1]} : vector<8x4xf32> to vector<8x1xf32>
    %236 = vector.extract_strided_slice %42 {offsets = [3, 0], sizes = [1, 256], strides = [1, 1]} : vector<4x256xf32> to vector<1x256xf32>
    %237 = vector.broadcast %235 : vector<8x1xf32> to vector<8x256xf32>
    %238 = vector.broadcast %236 : vector<1x256xf32> to vector<8x256xf32>
    %239 = arith.mulf %237, %238 : vector<8x256xf32>
    %240 = arith.addf %234, %239 : vector<8x256xf32>
    %c1_59 = arith.constant 1 : index
    %c0_60 = arith.constant 0 : index
    %c0_61 = arith.constant 0 : index
    %241 = vector.load %arg8[%c1_59, %c0_60, %c0_61] : memref<3x8x4xf32, #tpu.memory_space<vmem>>, vector<1x8x4xf32>
    %242 = vector.shape_cast %241 : vector<1x8x4xf32> to vector<8x4xf32>
    %243 = vector.extract_strided_slice %242 {offsets = [0, 0], sizes = [8, 1], strides = [1, 1]} : vector<8x4xf32> to vector<8x1xf32>
    %244 = vector.extract_strided_slice %43 {offsets = [0, 0], sizes = [1, 256], strides = [1, 1]} : vector<4x256xf32> to vector<1x256xf32>
    %245 = vector.broadcast %243 : vector<8x1xf32> to vector<8x256xf32>
    %246 = vector.broadcast %244 : vector<1x256xf32> to vector<8x256xf32>
    %247 = arith.mulf %245, %246 : vector<8x256xf32>
    %248 = vector.extract_strided_slice %242 {offsets = [0, 1], sizes = [8, 1], strides = [1, 1]} : vector<8x4xf32> to vector<8x1xf32>
    %249 = vector.extract_strided_slice %43 {offsets = [1, 0], sizes = [1, 256], strides = [1, 1]} : vector<4x256xf32> to vector<1x256xf32>
    %250 = vector.broadcast %248 : vector<8x1xf32> to vector<8x256xf32>
    %251 = vector.broadcast %249 : vector<1x256xf32> to vector<8x256xf32>
    %252 = arith.mulf %250, %251 : vector<8x256xf32>
    %253 = arith.addf %247, %252 : vector<8x256xf32>
    %254 = vector.extract_strided_slice %242 {offsets = [0, 2], sizes = [8, 1], strides = [1, 1]} : vector<8x4xf32> to vector<8x1xf32>
    %255 = vector.extract_strided_slice %43 {offsets = [2, 0], sizes = [1, 256], strides = [1, 1]} : vector<4x256xf32> to vector<1x256xf32>
    %256 = vector.broadcast %254 : vector<8x1xf32> to vector<8x256xf32>
    %257 = vector.broadcast %255 : vector<1x256xf32> to vector<8x256xf32>
    %258 = arith.mulf %256, %257 : vector<8x256xf32>
    %259 = arith.addf %253, %258 : vector<8x256xf32>
    %260 = vector.extract_strided_slice %242 {offsets = [0, 3], sizes = [8, 1], strides = [1, 1]} : vector<8x4xf32> to vector<8x1xf32>
    %261 = vector.extract_strided_slice %43 {offsets = [3, 0], sizes = [1, 256], strides = [1, 1]} : vector<4x256xf32> to vector<1x256xf32>
    %262 = vector.broadcast %260 : vector<8x1xf32> to vector<8x256xf32>
    %263 = vector.broadcast %261 : vector<1x256xf32> to vector<8x256xf32>
    %264 = arith.mulf %262, %263 : vector<8x256xf32>
    %265 = arith.addf %259, %264 : vector<8x256xf32>
    %266 = arith.addf %240, %265 : vector<8x256xf32>
    %c2_62 = arith.constant 2 : index
    %c0_63 = arith.constant 0 : index
    %c0_64 = arith.constant 0 : index
    %267 = vector.load %arg8[%c2_62, %c0_63, %c0_64] : memref<3x8x4xf32, #tpu.memory_space<vmem>>, vector<1x8x4xf32>
    %268 = vector.shape_cast %267 : vector<1x8x4xf32> to vector<8x4xf32>
    %269 = vector.extract_strided_slice %268 {offsets = [0, 0], sizes = [8, 1], strides = [1, 1]} : vector<8x4xf32> to vector<8x1xf32>
    %270 = vector.extract_strided_slice %215 {offsets = [0, 0], sizes = [1, 256], strides = [1, 1]} : vector<4x256xf32> to vector<1x256xf32>
    %271 = vector.broadcast %269 : vector<8x1xf32> to vector<8x256xf32>
    %272 = vector.broadcast %270 : vector<1x256xf32> to vector<8x256xf32>
    %273 = arith.mulf %271, %272 : vector<8x256xf32>
    %274 = vector.extract_strided_slice %268 {offsets = [0, 1], sizes = [8, 1], strides = [1, 1]} : vector<8x4xf32> to vector<8x1xf32>
    %275 = vector.extract_strided_slice %215 {offsets = [1, 0], sizes = [1, 256], strides = [1, 1]} : vector<4x256xf32> to vector<1x256xf32>
    %276 = vector.broadcast %274 : vector<8x1xf32> to vector<8x256xf32>
    %277 = vector.broadcast %275 : vector<1x256xf32> to vector<8x256xf32>
    %278 = arith.mulf %276, %277 : vector<8x256xf32>
    %279 = arith.addf %273, %278 : vector<8x256xf32>
    %280 = vector.extract_strided_slice %268 {offsets = [0, 2], sizes = [8, 1], strides = [1, 1]} : vector<8x4xf32> to vector<8x1xf32>
    %281 = vector.extract_strided_slice %215 {offsets = [2, 0], sizes = [1, 256], strides = [1, 1]} : vector<4x256xf32> to vector<1x256xf32>
    %282 = vector.broadcast %280 : vector<8x1xf32> to vector<8x256xf32>
    %283 = vector.broadcast %281 : vector<1x256xf32> to vector<8x256xf32>
    %284 = arith.mulf %282, %283 : vector<8x256xf32>
    %285 = arith.addf %279, %284 : vector<8x256xf32>
    %286 = vector.extract_strided_slice %268 {offsets = [0, 3], sizes = [8, 1], strides = [1, 1]} : vector<8x4xf32> to vector<8x1xf32>
    %287 = vector.extract_strided_slice %215 {offsets = [3, 0], sizes = [1, 256], strides = [1, 1]} : vector<4x256xf32> to vector<1x256xf32>
    %288 = vector.broadcast %286 : vector<8x1xf32> to vector<8x256xf32>
    %289 = vector.broadcast %287 : vector<1x256xf32> to vector<8x256xf32>
    %290 = arith.mulf %288, %289 : vector<8x256xf32>
    %291 = arith.addf %285, %290 : vector<8x256xf32>
    %292 = arith.addf %266, %291 : vector<8x256xf32>
    %c0_65 = arith.constant 0 : index
    %c0_66 = arith.constant 0 : index
    %293 = vector.load %arg9[%c0_65, %c0_66] : memref<8x1xf32, #tpu.memory_space<vmem>>, vector<8x1xf32>
    %294 = vector.broadcast %293 : vector<8x1xf32> to vector<8x256xf32>
    %295 = arith.addf %292, %294 : vector<8x256xf32>
    %cst_67 = arith.constant 5.000000e-01 : f32
    %296 = vector.broadcast %cst_67 : f32 to vector<8x256xf32>
    %297 = arith.mulf %296, %295 : vector<8x256xf32>
    %298 = math.tanh %297 : vector<8x256xf32>
    %cst_68 = arith.constant 1.000000e+00 : f32
    %299 = vector.broadcast %cst_68 : f32 to vector<8x256xf32>
    %300 = arith.addf %298, %299 : vector<8x256xf32>
    %cst_69 = arith.constant 5.000000e-01 : f32
    %301 = vector.broadcast %cst_69 : f32 to vector<8x256xf32>
    %302 = arith.mulf %301, %300 : vector<8x256xf32>
    %303 = arith.mulf %295, %302 : vector<8x256xf32>
    %c0_70 = arith.constant 0 : index
    %c0_71 = arith.constant 0 : index
    %c0_72 = arith.constant 0 : index
    %304 = vector.load %arg10[%c0_70, %c0_71, %c0_72] : memref<1x8x256xf32, #tpu.memory_space<vmem>>, vector<1x8x256xf32>
    %305 = vector.shape_cast %304 : vector<1x8x256xf32> to vector<8x256xf32>
    %306 = vector.shape_cast %303 : vector<8x256xf32> to vector<1x8x256xf32>
    tpu.vector_store %arg10[%c0_70, %c0_71, %c0_72], %306 {strides = array<i32>} : memref<1x8x256xf32, #tpu.memory_space<vmem>>, vector<1x8x256xf32>,
    return
  }
  func.func @transform_0(%arg0: i32) -> (i32, i32, i32) {
    %c0_i32 = arith.constant 0 : i32
    %c0_i32_0 = arith.constant 0 : i32
    %c0_i32_1 = arith.constant 0 : i32
    return %arg0, %c0_i32, %c0_i32_0 : i32, i32, i32
  }
  func.func @transform_1(%arg0: i32) -> (i32, i32) {
    %c0_i32 = arith.constant 0 : i32
    %c0_i32_0 = arith.constant 0 : i32
    %c0_i32_1 = arith.constant 0 : i32
    return %c0_i32, %c0_i32_0 : i32, i32
  }
  func.func @transform_2(%arg0: i32) -> (i32, i32) {
    %c0_i32 = arith.constant 0 : i32
    %c0_i32_0 = arith.constant 0 : i32
    %c0_i32_1 = arith.constant 0 : i32
    return %c0_i32, %c0_i32_0 : i32, i32
  }
  func.func @transform_3(%arg0: i32) -> (i32, i32) {
    %c0_i32 = arith.constant 0 : i32
    %c0_i32_0 = arith.constant 0 : i32
    %c0_i32_1 = arith.constant 0 : i32
    return %c0_i32, %c0_i32_0 : i32, i32
  }
  func.func @transform_4(%arg0: i32) -> (i32, i32, i32) {
    %c0_i32 = arith.constant 0 : i32
    %c0_i32_0 = arith.constant 0 : i32
    %c0_i32_1 = arith.constant 0 : i32
    %c0_i32_2 = arith.constant 0 : i32
    return %c0_i32, %c0_i32_0, %c0_i32_1 : i32, i32, i32
  }
  func.func @transform_5(%arg0: i32) -> (i32, i32) {
    %c0_i32 = arith.constant 0 : i32
    %c0_i32_0 = arith.constant 0 : i32
    %c0_i32_1 = arith.constant 0 : i32
    return %c0_i32, %c0_i32_0 : i32, i32
  }
  func.func @transform_6(%arg0: i32) -> (i32, i32) {
    %c0_i32 = arith.constant 0 : i32
    %c0_i32_0 = arith.constant 0 : i32
    %c0_i32_1 = arith.constant 0 : i32
    return %c0_i32, %c0_i32_0 : i32, i32
  }
  func.func @transform_7(%arg0: i32) -> (i32, i32, i32) {
    %c0_i32 = arith.constant 0 : i32
    %c0_i32_0 = arith.constant 0 : i32
    %c0_i32_1 = arith.constant 0 : i32
    %c0_i32_2 = arith.constant 0 : i32
    return %c0_i32, %c0_i32_0, %c0_i32_1 : i32, i32, i32
  }
  func.func @transform_8(%arg0: i32) -> (i32, i32) {
    %c0_i32 = arith.constant 0 : i32
    %c0_i32_0 = arith.constant 0 : i32
    %c0_i32_1 = arith.constant 0 : i32
    return %c0_i32, %c0_i32_0 : i32, i32
  }
  func.func @transform_9(%arg0: i32) -> (i32, i32, i32) {
    %c0_i32 = arith.constant 0 : i32
    %c0_i32_0 = arith.constant 0 : i32
    %c0_i32_1 = arith.constant 0 : i32
    return %arg0, %c0_i32, %c0_i32_0 : i32, i32, i32
  }
}

</mosaic_0001>

<llo_original>
// kernel: _lambda_.1
$region0: #{_lambda_.1}
  #allocation0 [shape = 'u32[]', space=smem, size = 0x4, offset = 0x4, fixed_abs, tag = 'smem constant byte address 0x4 - core index']
  #allocation1 [shape = 'u32[72,128]{1,0:T(1,128)}', space=vmem, size = 0x9000, scoped, tag = 'internal scratch']
  #allocation2 [shape = 'f32[4,512]{1,0:T(4,128)}', space=vmem, size = 0x2000, scoped, tag = 'scratch operand']
  %s0 = inlined_call_operand.vmem [shape: f32[2,4,256], index: 0, kind: input, shape index: {}]
  %s1 = inlined_call_operand.vmem [shape: f32[2,256], index: 1, kind: input, shape index: {}]
  %s2 = inlined_call_operand.vmem [shape: f32[8,4], index: 2, kind: input, shape index: {}]
  %s3 = inlined_call_operand.vmem [shape: f32[8,1], index: 3, kind: input, shape index: {}]
  %s4 = inlined_call_operand.vmem [shape: f32[3,4,4], index: 4, kind: input, shape index: {}]
  %s5 = inlined_call_operand.vmem [shape: f32[4,4], index: 5, kind: input, shape index: {}]
  %s6 = inlined_call_operand.vmem [shape: f32[4,9], index: 6, kind: input, shape index: {}]
  %s7 = inlined_call_operand.vmem [shape: f32[3,8,4], index: 7, kind: input, shape index: {}]
  %s8 = inlined_call_operand.vmem [shape: f32[8,1], index: 8, kind: input, shape index: {}]
  %s9 = inlined_call_operand.vmem [shape: f32[2,8,256], index: 9, kind: output, shape index: {}]
  %s10 = sld [smem:[#allocation0]]
  $region69: #{_lambda_.1} parent=0
    _
  %s12 = ssub.s32 1, %s10
  %s13 = scalar_select 0, %s12, %s10
  loop: start=0, step=1, limit=4
  $region2: #{_lambda_.1} parent=0 // loop_pre_header
    _
  $region3: #{_lambda_.1} parent=0 // loop_header
    %s15 = sphi 0, %s19
    %p16 = scmp.ge.s32.totalorder %s15, 4
    %s25 = sphi 0, %s27
    %s28 = sphi 0, %s25
    %s29 = sphi 0, %s28
    %s45 = sphi 0, %s29
    %s49 = sphi 0, %s49
    %s51 = sphi 0, %s49
    %s52 = sphi 0, %s51
    %s66 = sphi 0, %s52
    %s70 = sphi 0, %s70
    %s72 = sphi 0, %s70
    %s73 = sphi 0, %s72
    %s87 = sphi 0, %s73
    %s91 = sphi 0, %s91
    %s93 = sphi 0, %s91
    %s94 = sphi 0, %s93
    %s108 = sphi 0, %s94
    %s112 = sphi 0, %s112
    %s114 = sphi 0, %s112
    %s115 = sphi 0, %s114
    %s129 = sphi 0, %s115
    %s133 = sphi 0, %s133
    %s135 = sphi 0, %s133
    %s136 = sphi 0, %s135
    %s150 = sphi 0, %s136
    %s154 = sphi 0, %s154
    %s156 = sphi 0, %s154
    %s157 = sphi 0, %s156
    %s171 = sphi 0, %s157
    %s175 = sphi 0, %s175
    %s177 = sphi 0, %s175
    %s178 = sphi 0, %s177
    %s192 = sphi 0, %s178
    %s196 = sphi 0, %s196
    %s198 = sphi 0, %s196
    %s199 = sphi 0, %s198
    %s213 = sphi 0, %s199
    %s219 = sphi 0, %s221
    %s222 = sphi 0, %s219
    %s223 = sphi 0, %s222
    %s239 = sphi 0, %s223
  $region4: #{_lambda_.1} parent=0 // loop_header_branch
    %18 = sbr.rel (%p16) target = $region8
  $region5: #{_lambda_.1} parent=0 // loop_body
    %s20 = ssub.s32 %s15, 1
    %s21 = ssub.s32 %s15, 2
    %s22 = sadd.s32 %s15, 1
    %s23 = ssub.s32 %s15, %s22
    %p24 = scmp.eq.s32.totalorder %s23, 0
    %s26 = sadd.s32 %s25, 1
    %s27 = scalar_select %p24, %s25, %s26
    %p30 = pneg %p24
    %p31 = scmp.eq.s32.totalorder %s15, 1
    %p32 = por %p30, %p31
    %p33 = scmp.ne.s32.totalorder %s25, %s28
    %p34 = scmp.eq.s32.totalorder %s15, 0
    %p35 = por %p33, %p34
    %p36 = scmp.ne.s32.totalorder %s25, %s28
    %p37 = scmp.eq.s32.totalorder %s20, 1
    %p38 = por %p36, %p37
    %p39 = scmp.ne.s32.totalorder %s28, %s29
    %p40 = scmp.eq.s32.totalorder %s20, 0
    %p41 = por %p39, %p40
    %p42 = scmp.ne.s32.totalorder %s28, %s29
    %p43 = scmp.eq.s32.totalorder %s21, 1
    %p44 = por %p42, %p43
    %p46 = scmp.ne.s32.totalorder %s29, %s45
    %p47 = scmp.eq.s32.totalorder %s21, 0
    %p48 = por %p46, %p47
    %s50 = sadd.s32 %s49, 1
    %p53 = scmp.eq.s32.totalorder %s15, 1
    %p54 = scmp.ne.s32.totalorder %s49, %s51
    %p55 = scmp.eq.s32.totalorder %s15, 0
    %p56 = por %p54, %p55
    %p57 = scmp.ne.s32.totalorder %s49, %s51
    %p58 = scmp.eq.s32.totalorder %s20, 1
    %p59 = por %p57, %p58
    %p60 = scmp.ne.s32.totalorder %s51, %s52
    %p61 = scmp.eq.s32.totalorder %s20, 0
    %p62 = por %p60, %p61
    %p63 = scmp.ne.s32.totalorder %s51, %s52
    %p64 = scmp.eq.s32.totalorder %s21, 1
    %p65 = por %p63, %p64
    %p67 = scmp.ne.s32.totalorder %s52, %s66
    %p68 = scmp.eq.s32.totalorder %s21, 0
    %p69 = por %p67, %p68
    %s71 = sadd.s32 %s70, 1
    %p74 = scmp.eq.s32.totalorder %s15, 1
    %p75 = scmp.ne.s32.totalorder %s70, %s72
    %p76 = scmp.eq.s32.totalorder %s15, 0
    %p77 = por %p75, %p76
    %p78 = scmp.ne.s32.totalorder %s70, %s72
    %p79 = scmp.eq.s32.totalorder %s20, 1
    %p80 = por %p78, %p79
    %p81 = scmp.ne.s32.totalorder %s72, %s73
    %p82 = scmp.eq.s32.totalorder %s20, 0
    %p83 = por %p81, %p82
    %p84 = scmp.ne.s32.totalorder %s72, %s73
    %p85 = scmp.eq.s32.totalorder %s21, 1
    %p86 = por %p84, %p85
    %p88 = scmp.ne.s32.totalorder %s73, %s87
    %p89 = scmp.eq.s32.totalorder %s21, 0
    %p90 = por %p88, %p89
    %s92 = sadd.s32 %s91, 1
    %p95 = scmp.eq.s32.totalorder %s15, 1
    %p96 = scmp.ne.s32.totalorder %s91, %s93
    %p97 = scmp.eq.s32.totalorder %s15, 0
    %p98 = por %p96, %p97
    %p99 = scmp.ne.s32.totalorder %s91, %s93
    %p100 = scmp.eq.s32.totalorder %s20, 1
    %p101 = por %p99, %p100
    %p102 = scmp.ne.s32.totalorder %s93, %s94
    %p103 = scmp.eq.s32.totalorder %s20, 0
    %p104 = por %p102, %p103
    %p105 = scmp.ne.s32.totalorder %s93, %s94
    %p106 = scmp.eq.s32.totalorder %s21, 1
    %p107 = por %p105, %p106
    %p109 = scmp.ne.s32.totalorder %s94, %s108
    %p110 = scmp.eq.s32.totalorder %s21, 0
    %p111 = por %p109, %p110
    %s113 = sadd.s32 %s112, 1
    %p116 = scmp.eq.s32.totalorder %s15, 1
    %p117 = scmp.ne.s32.totalorder %s112, %s114
    %p118 = scmp.eq.s32.totalorder %s15, 0
    %p119 = por %p117, %p118
    %p120 = scmp.ne.s32.totalorder %s112, %s114
    %p121 = scmp.eq.s32.totalorder %s20, 1
    %p122 = por %p120, %p121
    %p123 = scmp.ne.s32.totalorder %s114, %s115
    %p124 = scmp.eq.s32.totalorder %s20, 0
    %p125 = por %p123, %p124
    %p126 = scmp.ne.s32.totalorder %s114, %s115
    %p127 = scmp.eq.s32.totalorder %s21, 1
    %p128 = por %p126, %p127
    %p130 = scmp.ne.s32.totalorder %s115, %s129
    %p131 = scmp.eq.s32.totalorder %s21, 0
    %p132 = por %p130, %p131
    %s134 = sadd.s32 %s133, 1
    %p137 = scmp.eq.s32.totalorder %s15, 1
    %p138 = scmp.ne.s32.totalorder %s133, %s135
    %p139 = scmp.eq.s32.totalorder %s15, 0
    %p140 = por %p138, %p139
    %p141 = scmp.ne.s32.totalorder %s133, %s135
    %p142 = scmp.eq.s32.totalorder %s20, 1
    %p143 = por %p141, %p142
    %p144 = scmp.ne.s32.totalorder %s135, %s136
    %p145 = scmp.eq.s32.totalorder %s20, 0
    %p146 = por %p144, %p145
    %p147 = scmp.ne.s32.totalorder %s135, %s136
    %p148 = scmp.eq.s32.totalorder %s21, 1
    %p149 = por %p147, %p148
    %p151 = scmp.ne.s32.totalorder %s136, %s150
    %p152 = scmp.eq.s32.totalorder %s21, 0
    %p153 = por %p151, %p152
    %s155 = sadd.s32 %s154, 1
    %p158 = scmp.eq.s32.totalorder %s15, 1
    %p159 = scmp.ne.s32.totalorder %s154, %s156
    %p160 = scmp.eq.s32.totalorder %s15, 0
    %p161 = por %p159, %p160
    %p162 = scmp.ne.s32.totalorder %s154, %s156
    %p163 = scmp.eq.s32.totalorder %s20, 1
    %p164 = por %p162, %p163
    %p165 = scmp.ne.s32.totalorder %s156, %s157
    %p166 = scmp.eq.s32.totalorder %s20, 0
    %p167 = por %p165, %p166
    %p168 = scmp.ne.s32.totalorder %s156, %s157
    %p169 = scmp.eq.s32.totalorder %s21, 1
    %p170 = por %p168, %p169
    %p172 = scmp.ne.s32.totalorder %s157, %s171
    %p173 = scmp.eq.s32.totalorder %s21, 0
    %p174 = por %p172, %p173
    %s176 = sadd.s32 %s175, 1
    %p179 = scmp.eq.s32.totalorder %s15, 1
    %p180 = scmp.ne.s32.totalorder %s175, %s177
    %p181 = scmp.eq.s32.totalorder %s15, 0
    %p182 = por %p180, %p181
    %p183 = scmp.ne.s32.totalorder %s175, %s177
    %p184 = scmp.eq.s32.totalorder %s20, 1
    %p185 = por %p183, %p184
    %p186 = scmp.ne.s32.totalorder %s177, %s178
    %p187 = scmp.eq.s32.totalorder %s20, 0
    %p188 = por %p186, %p187
    %p189 = scmp.ne.s32.totalorder %s177, %s178
    %p190 = scmp.eq.s32.totalorder %s21, 1
    %p191 = por %p189, %p190
    %p193 = scmp.ne.s32.totalorder %s178, %s192
    %p194 = scmp.eq.s32.totalorder %s21, 0
    %p195 = por %p193, %p194
    %s197 = sadd.s32 %s196, 1
    %p200 = scmp.eq.s32.totalorder %s15, 1
    %p201 = scmp.ne.s32.totalorder %s196, %s198
    %p202 = scmp.eq.s32.totalorder %s15, 0
    %p203 = por %p201, %p202
    %p204 = scmp.ne.s32.totalorder %s196, %s198
    %p205 = scmp.eq.s32.totalorder %s20, 1
    %p206 = por %p204, %p205
    %p207 = scmp.ne.s32.totalorder %s198, %s199
    %p208 = scmp.eq.s32.totalorder %s20, 0
    %p209 = por %p207, %p208
    %p210 = scmp.ne.s32.totalorder %s198, %s199
    %p211 = scmp.eq.s32.totalorder %s21, 1
    %p212 = por %p210, %p211
    %p214 = scmp.ne.s32.totalorder %s199, %s213
    %p215 = scmp.eq.s32.totalorder %s21, 0
    %p216 = por %p214, %p215
    %s217 = ssub.s32 %s15, %s22
    %p218 = scmp.eq.s32.totalorder %s217, 0
    %s220 = sadd.s32 %s219, 1
    %s221 = scalar_select %p218, %s219, %s220
    %p224 = pneg %p218
    %p225 = scmp.eq.s32.totalorder %s15, 1
    %p226 = por %p224, %p225
    %p227 = scmp.ne.s32.totalorder %s219, %s222
    %p228 = scmp.eq.s32.totalorder %s15, 0
    %p229 = por %p227, %p228
    %p230 = scmp.ne.s32.totalorder %s219, %s222
    %p231 = scmp.eq.s32.totalorder %s20, 1
    %p232 = por %p230, %p231
    %p233 = scmp.ne.s32.totalorder %s222, %s223
    %p234 = scmp.eq.s32.totalorder %s20, 0
    %p235 = por %p233, %p234
    %p236 = scmp.ne.s32.totalorder %s222, %s223
    %p237 = scmp.eq.s32.totalorder %s21, 1
    %p238 = por %p236, %p237
    %p240 = scmp.ne.s32.totalorder %s223, %s239
    %p241 = scmp.eq.s32.totalorder %s21, 0
    %p242 = por %p240, %p241
    %p243 = scmp.le.s32.totalorder 1, %s15
    %p244 = scmp.lt.s32.totalorder %s15, 3
    %p245 = pnand %p243, %p244
    %p246 = pneg %p245
    // Predicated region
    $region9: #{_lambda_.1} parent=5 // pred_check
      _
    $region10: #{_lambda_.1} parent=5 // pred_check_branch
      %248 = sbr.rel (%p245) target = $region12
    $region11: #{_lambda_.1} parent=5 // pred_region
      %s249 = ssub.s32 %s15, 1
      // Predicated region
      $region13: #{_lambda_.1} parent=11 // pred_check
        %p250 = pneg %p62
      $region14: #{_lambda_.1} parent=11 // pred_check_branch
        %252 = sbr.rel (%p250) target = $region16
      $region15: #{_lambda_.1} parent=11 // pred_region
        _
      $region16: #{_lambda_.1} parent=11 // pred_fallthru
        _
      // Predicated region
      $region17: #{_lambda_.1} parent=11 // pred_check
        %p253 = pneg %p83
      $region18: #{_lambda_.1} parent=11 // pred_check_branch
        %255 = sbr.rel (%p253) target = $region20
      $region19: #{_lambda_.1} parent=11 // pred_region
        _
      $region20: #{_lambda_.1} parent=11 // pred_fallthru
        _
      // Predicated region
      $region21: #{_lambda_.1} parent=11 // pred_check
        %p256 = pneg %p104
      $region22: #{_lambda_.1} parent=11 // pred_check_branch
        %258 = sbr.rel (%p256) target = $region24
      $region23: #{_lambda_.1} parent=11 // pred_region
        _
      $region24: #{_lambda_.1} parent=11 // pred_fallthru
        _
      // Predicated region
      $region25: #{_lambda_.1} parent=11 // pred_check
        %p259 = pneg %p125
      $region26: #{_lambda_.1} parent=11 // pred_check_branch
        %261 = sbr.rel (%p259) target = $region28
      $region27: #{_lambda_.1} parent=11 // pred_region
        _
      $region28: #{_lambda_.1} parent=11 // pred_fallthru
        _
      // Predicated region
      $region29: #{_lambda_.1} parent=11 // pred_check
        %p262 = pneg %p146
      $region30: #{_lambda_.1} parent=11 // pred_check_branch
        %264 = sbr.rel (%p262) target = $region32
      $region31: #{_lambda_.1} parent=11 // pred_region
        _
      $region32: #{_lambda_.1} parent=11 // pred_fallthru
        _
      // Predicated region
      $region33: #{_lambda_.1} parent=11 // pred_check
        %p265 = pneg %p167
      $region34: #{_lambda_.1} parent=11 // pred_check_branch
        %267 = sbr.rel (%p265) target = $region36
      $region35: #{_lambda_.1} parent=11 // pred_region
        _
      $region36: #{_lambda_.1} parent=11 // pred_fallthru
        _
      // Predicated region
      $region37: #{_lambda_.1} parent=11 // pred_check
        %p268 = pneg %p188
      $region38: #{_lambda_.1} parent=11 // pred_check_branch
        %270 = sbr.rel (%p268) target = $region40
      $region39: #{_lambda_.1} parent=11 // pred_region
        _
      $region40: #{_lambda_.1} parent=11 // pred_fallthru
        _
      // Predicated region
      $region41: #{_lambda_.1} parent=11 // pred_check
        %p271 = pneg %p209
      $region42: #{_lambda_.1} parent=11 // pred_check_branch
        %273 = sbr.rel (%p271) target = $region44
      $region43: #{_lambda_.1} parent=11 // pred_region
        _
      $region44: #{_lambda_.1} parent=11 // pred_fallthru
        _
    $region12: #{_lambda_.1} parent=5 // pred_fallthru
      _
    %p274 = scmp.lt.s32.totalorder %s15, 2
    // Predicated region
    $region45: #{_lambda_.1} parent=5 // pred_check
      %p275 = pneg %p274
    $region46: #{_lambda_.1} parent=5 // pred_check_branch
      %277 = sbr.rel (%p275) target = $region48
    $region47: #{_lambda_.1} parent=5 // pred_region
      // Predicated region
      $region49: #{_lambda_.1} parent=47 // pred_check
        %p278 = pneg %p35
      $region50: #{_lambda_.1} parent=47 // pred_check_branch
        %280 = sbr.rel (%p278) target = $region52
      $region51: #{_lambda_.1} parent=47 // pred_region
        %p281 = scmp.lt.s32.totalorder %s15, 1
        %s282 = scalar_select %p281, %s15, 1
        %s283 = smul.addr %s282, 2
        %s284 = smul.addr %s283, 4
        %s285 = scalar_lea.vmem %s0, %s284
      $region52: #{_lambda_.1} parent=47 // pred_fallthru
        _
    $region48: #{_lambda_.1} parent=5 // pred_fallthru
      _
    %p286 = scmp.le.s32.totalorder 1, %s15
    %p287 = scmp.lt.s32.totalorder %s15, 3
    %p288 = pnand %p286, %p287
    %p289 = pneg %p288
    // Predicated region
    $region53: #{_lambda_.1} parent=5 // pred_check
      _
    $region54: #{_lambda_.1} parent=5 // pred_check_branch
      %291 = sbr.rel (%p288) target = $region56
    $region55: #{_lambda_.1} parent=5 // pred_region
      %s292 = ssub.s32 %s15, 1
      %p293 = scmp.lt.s32.totalorder %s20, 1
      %s294 = scalar_select %p293, %s20, 1
      %s295 = smul.addr %s294, 2
      %s296 = smul.addr %s295, 4
      %s297 = scalar_lea.vmem %s0, %s296
      %p298 = pneg %p41
      %p299 = pneg %p38
      %p300 = pneg %p62
      %p301 = pneg %p59
      %p302 = pneg %p83
      %p303 = pneg %p80
      %p304 = pneg %p104
      %p305 = pneg %p101
      %p306 = pneg %p125
      %p307 = pneg %p122
      %p308 = pneg %p146
      %p309 = pneg %p143
      %p310 = pneg %p167
      %p311 = pneg %p164
      %p312 = pneg %p188
      %p313 = pneg %p185
      %p314 = pneg %p209
      %p315 = pneg %p206
      %p316 = pneg %p235
      %p317 = pneg %p232
      %p318 = scmp.lt.s32.totalorder %s20, 1
      %s319 = scalar_select %p318, %s20, 1
      %s320 = smul.addr %s319, 2
      %s321 = smul.addr %s320, 8
      %s322 = scalar_lea.vmem %s9, %s321
      %p323 = scmp.lt.s32.totalorder %s20, 1
      %s324 = scalar_select %p323, %s20, 1
      %s325 = smul.addr %s324, 2
      %s326 = smul.addr %s325, 4
      %s327 = scalar_lea.vmem %s0, %s326
      %p328 = scmp.lt.s32.totalorder %s20, 1
      %s329 = scalar_select %p328, %s20, 1
      %s330 = smul.addr %s329, 2
      %s331 = smul.addr %s330, 8
      %s332 = scalar_lea.vmem %s9, %s331
      %v333 = vld [vmem:[%s327] sm:$0xff]
      %v334 = vld [vmem:[%s1] ss:$2 sm:$0x3]
      %s335 = scalar_lea.vmem %s1, 1
      %v336 = vld [vmem:[%s335] ss:$2 sm:$0x3]
      %337 = vst [vmem:[#allocation2] sm:$0xf] 0.0
      %338 = vst [vmem:[#allocation2 + $0xc] sm:$0xf] 0.0
      %v339 = vld [vmem:[%s2] sm:$0xff]
      %v340 = vld [vmem:[%s3] sm:$0xff]
      %342 = vset.pattern.permute.xlu0 0
      %343 = vperm.xlu0 %342, %v339
      %v344 = vpop.permute.xlu0 %343
      %v347 = vperm.slane %v333, 0
      %v348 = vperm.slane %v333, 4
      %v351 = vperm.slane %v347, 0
      %v352 = vperm.slane %v348, 0
      %v353 = vmul.f32 %v344, %v351
      %v354 = vmul.f32 %v344, %v352
      %356 = vset.pattern.permute.xlu0 0
      %357 = vperm.xlu0 %356, %v340
      %v358 = vpop.permute.xlu0 %357
      %v360 = vadd.f32 %v353, %v358
      %v361 = vadd.f32 %v354, %v358
      %362 = vset.pattern.permute.xlu0 1
      %363 = vperm.xlu0 %362, %v339
      %v364 = vpop.permute.xlu0 %363
      %v366 = vperm.slane %v333, 1
      %v367 = vperm.slane %v333, 5
      %v370 = vperm.slane %v366, 1
      %v371 = vperm.slane %v367, 1
      %v372 = vmul.f32 %v364, %v370
      %v373 = vmul.f32 %v364, %v371
      %v374 = vadd.f32 %v360, %v372
      %v375 = vadd.f32 %v361, %v373
      %376 = vset.pattern.permute.xlu0 2
      %377 = vperm.xlu0 %376, %v339
      %v378 = vpop.permute.xlu0 %377
      %v380 = vperm.slane %v333, 2
      %v381 = vperm.slane %v333, 6
      %v384 = vperm.slane %v380, 2
      %v385 = vperm.slane %v381, 2
      %v386 = vmul.f32 %v378, %v384
      %v387 = vmul.f32 %v378, %v385
      %v388 = vadd.f32 %v374, %v386
      %v389 = vadd.f32 %v375, %v387
      %390 = vset.pattern.permute.xlu0 3
      %391 = vperm.xlu0 %390, %v339
      %v392 = vpop.permute.xlu0 %391
      %v394 = vperm.slane %v333, 3
      %v395 = vperm.slane %v333, 7
      %v398 = vperm.slane %v394, 3
      %v399 = vperm.slane %v395, 3
      %v400 = vmul.f32 %v392, %v398
      %v401 = vmul.f32 %v392, %v399
      %v402 = vadd.f32 %v388, %v400
      %v403 = vadd.f32 %v389, %v401
      %v404 = vmul.f32 %v402, 0.5
      %v405 = vmul.f32 %v403, 0.5
      %v406 = vtanh.pop %v404
      %v407 = vtanh.pop %v405
      %v408 = vadd.f32 %v406, 1.0
      %v409 = vadd.f32 %v407, 1.0
      %v410 = vmul.f32 %v408, 0.5
      %v411 = vmul.f32 %v409, 0.5
      %v412 = vmul.f32 %v402, %v410
      %v413 = vmul.f32 %v403, %v411
      %v414 = vld [vmem:[%s4] sm:$0xf]
      %s415 = scalar_lea.vmem %s4, 4
      %v416 = vld [vmem:[%s415] sm:$0xf]
      %s417 = scalar_lea.vmem %s4, 8
      %v418 = vld [vmem:[%s417] sm:$0xf]
      %v419 = vld [vmem:[%s5] sm:$0xf]
      %421 = vset.pattern.permute.xlu0 0
      %422 = vperm.xlu0 %421, %v414
      %v423 = vpop.permute.xlu0 %422
      %v425 = vperm.slane %v412, 4
      %v426 = vperm.slane %v413, 4
      %v427 = vmul.f32 %v423, %v425
      %v428 = vmul.f32 %v423, %v426
      %430 = vset.pattern.permute.xlu0 0
      %431 = vperm.xlu0 %430, %v419
      %v432 = vpop.permute.xlu0 %431
      %v434 = vadd.f32 %v427, %v432
      %v435 = vadd.f32 %v428, %v432
      %436 = vset.pattern.permute.xlu0 1
      %437 = vperm.xlu0 %436, %v414
      %v438 = vpop.permute.xlu0 %437
      %v440 = vperm.slane %v412, 5
      %v441 = vperm.slane %v413, 5
      %v442 = vmul.f32 %v438, %v440
      %v443 = vmul.f32 %v438, %v441
      %v444 = vadd.f32 %v434, %v442
      %v445 = vadd.f32 %v435, %v443
      %446 = vset.pattern.permute.xlu0 2
      %447 = vperm.xlu0 %446, %v414
      %v448 = vpop.permute.xlu0 %447
      %v450 = vperm.slane %v412, 6
      %v451 = vperm.slane %v413, 6
      %v452 = vmul.f32 %v448, %v450
      %v453 = vmul.f32 %v448, %v451
      %v454 = vadd.f32 %v444, %v452
      %v455 = vadd.f32 %v445, %v453
      %456 = vset.pattern.permute.xlu0 3
      %457 = vperm.xlu0 %456, %v414
      %v458 = vpop.permute.xlu0 %457
      %v460 = vperm.slane %v412, 7
      %v461 = vperm.slane %v413, 7
      %v462 = vmul.f32 %v458, %v460
      %v463 = vmul.f32 %v458, %v461
      %v464 = vadd.f32 %v454, %v462
      %v465 = vadd.f32 %v455, %v463
      %v466 = vadd.f32 %v464, 3.0
      %v467 = vadd.f32 %v465, 3.0
      %v468 = vmax.f32 %v466, 0.0
      %v469 = vmax.f32 %v467, 0.0
      %v470 = vmin.f32 %v468, 6.0
      %v471 = vmin.f32 %v469, 6.0
      %v472 = vmul.f32 %v464, %v470
      %v473 = vmul.f32 %v465, %v471
      %v474 = vmul.f32 %v472, 0.16666667
      %v475 = vmul.f32 %v473, 0.16666667
      %v476 = vld [vmem:[%s6] sm:$0xf]
      %v479 = vrot.slane %v475, 4
      %vm480 = vcmask 1043456
      %v481 = vsel %vm480, %v474, %v479
      %483 = vst [vmem:[#allocation2 + $0x4] sm:$0xff] %v481
      %v484 = vld [vmem:[#allocation2] sm:$0xff]
      %v485 = vld [vmem:[#allocation2 + $0x8] sm:$0xf]
      %v487 = vperm.slane %v334, 0
      %v488 = vperm.slane %v334, 1
      %v489 = vrot.slane %v488, 4
      %v490 = vsel %vm480, %v487, %v489
      %491 = vrot.lane.b32.xlu0 %v490, 111
      %v492 = vpop.permute.xlu0 %491
      %v493 = vrot.slane %v492, 4
      %vm494 = vcmask 908288
      %v495 = vsel %vm494, %v493, %v492
      %v498 = vmul.f32 %v484, %v495
      %v499 = vmul.f32 %v485, %v493
      %501 = vset.pattern.permute.xlu0 0
      %502 = vperm.xlu0 %501, %v476
      %v503 = vpop.permute.xlu0 %502
      %507 = vst [vmem:[#allocation1] ss:$2 sm:$0xff] %v498
      %s508 = scalar_lea.vmem [#allocation1], 16
      %509 = vst [vmem:[%s508] ss:$2 sm:$0xff] %v499
      %v510 = vld.sshfl [vmem:[#allocation1] sm:$0xff pattern:$0x75316420]
      %v511 = vld.sshfl [vmem:[#allocation1 + $0x8] sm:$0xff pattern:$0x75316420]
      %v512 = vld.sshfl [vmem:[#allocation1 + $0x10] sm:$0xff pattern:$0x75316420]
      %513 = vrot.lane.b32.xlu0 %v510, 17
      %v514 = vpop.permute.xlu0 %513
      %515 = vrot.lane.b32.xlu0 %v511, 17
      %v516 = vpop.permute.xlu0 %515
      %517 = vrot.lane.b32.xlu0 %v512, 17
      %v518 = vpop.permute.xlu0 %517
      %vm519 = vcmask 138240
      %v520 = vsel %vm519, %v514, %v516
      %v521 = vsel %vm519, %v516, %v518
      %v524 = vmul.f32 %v503, %v520
      %v525 = vmul.f32 %v503, %v521
      %v526 = vld [vmem:[#allocation2] sm:$0xff]
      %v527 = vld [vmem:[#allocation2 + $0x8] sm:$0xf]
      %528 = vset.pattern.permute.xlu0 1
      %529 = vperm.xlu0 %528, %v476
      %v530 = vpop.permute.xlu0 %529
      %534 = vst [vmem:[#allocation1] ss:$2 sm:$0xff] %v526
      %s535 = scalar_lea.vmem [#allocation1], 16
      %536 = vst [vmem:[%s535] ss:$2 sm:$0xff] %v527
      %v537 = vld.sshfl [vmem:[#allocation1] sm:$0xff pattern:$0x75316420]
      %v538 = vld.sshfl [vmem:[#allocation1 + $0x8] sm:$0xff pattern:$0x75316420]
      %v539 = vld.sshfl [vmem:[#allocation1 + $0x10] sm:$0xff pattern:$0x75316420]
      %540 = vrot.lane.b32.xlu0 %v537, 16
      %v541 = vpop.permute.xlu0 %540
      %542 = vrot.lane.b32.xlu0 %v538, 16
      %v543 = vpop.permute.xlu0 %542
      %544 = vrot.lane.b32.xlu0 %v539, 16
      %v545 = vpop.permute.xlu0 %544
      %vm546 = vcmask 130048
      %v547 = vsel %vm546, %v541, %v543
      %v548 = vsel %vm546, %v543, %v545
      %v551 = vmul.f32 %v530, %v547
      %v552 = vmul.f32 %v530, %v548
      %v553 = vadd.f32 %v524, %v551
      %v554 = vadd.f32 %v525, %v552
      %v555 = vld [vmem:[#allocation2] sm:$0xff]
      %v556 = vld [vmem:[#allocation2 + $0x8] sm:$0xf]
      %v558 = vperm.slane %v336, 0
      %v559 = vperm.slane %v336, 1
      %v560 = vrot.slane %v559, 4
      %v561 = vsel %vm480, %v558, %v560
      %562 = vrot.lane.b32.xlu0 %v561, 113
      %v563 = vpop.permute.xlu0 %562
      %v564 = vrot.slane %v563, 4
      %vm565 = vcmask 924672
      %v566 = vsel %vm565, %v564, %v563
      %v569 = vmul.f32 %v555, %v566
      %v570 = vmul.f32 %v556, %v564
      %571 = vset.pattern.permute.xlu0 2
      %572 = vperm.xlu0 %571, %v476
      %v573 = vpop.permute.xlu0 %572
      %577 = vst [vmem:[#allocation1] ss:$2 sm:$0xff] %v569
      %s578 = scalar_lea.vmem [#allocation1], 16
      %579 = vst [vmem:[%s578] ss:$2 sm:$0xff] %v570
      %v580 = vld.sshfl [vmem:[#allocation1] sm:$0xff pattern:$0x75316420]
      %v581 = vld.sshfl [vmem:[#allocation1 + $0x8] sm:$0xff pattern:$0x75316420]
      %v582 = vld.sshfl [vmem:[#allocation1 + $0x10] sm:$0xff pattern:$0x75316420]
      %583 = vrot.lane.b32.xlu0 %v580, 15
      %v584 = vpop.permute.xlu0 %583
      %585 = vrot.lane.b32.xlu0 %v581, 15
      %v586 = vpop.permute.xlu0 %585
      %587 = vrot.lane.b32.xlu0 %v582, 15
      %v588 = vpop.permute.xlu0 %587
      %vm589 = vcmask 121856
      %v590 = vsel %vm589, %v584, %v586
      %v591 = vsel %vm589, %v586, %v588
      %v594 = vmul.f32 %v573, %v590
      %v595 = vmul.f32 %v573, %v591
      %v596 = vadd.f32 %v553, %v594
      %v597 = vadd.f32 %v554, %v595
      %v598 = vld [vmem:[#allocation2] sm:$0xff]
      %v599 = vld [vmem:[#allocation2 + $0x8] sm:$0xf]
      %600 = vrot.lane.b32.xlu0 %v490, 127
      %v601 = vpop.permute.xlu0 %600
      %v602 = vrot.slane %v601, 4
      %vm603 = vcmask 1039360
      %v604 = vsel %vm603, %v602, %v601
      %v607 = vmul.f32 %v598, %v604
      %v608 = vmul.f32 %v599, %v602
      %609 = vset.pattern.permute.xlu0 3
      %610 = vperm.xlu0 %609, %v476
      %v611 = vpop.permute.xlu0 %610
      %615 = vst [vmem:[#allocation1] ss:$2 sm:$0xff] %v607
      %s616 = scalar_lea.vmem [#allocation1], 16
      %617 = vst [vmem:[%s616] ss:$2 sm:$0xff] %v608
      %v618 = vld.sshfl [vmem:[#allocation1] sm:$0xff pattern:$0x75316420]
      %v619 = vld.sshfl [vmem:[#allocation1 + $0x8] sm:$0xff pattern:$0x75316420]
      %v620 = vld.sshfl [vmem:[#allocation1 + $0x10] sm:$0xff pattern:$0x75316420]
      %621 = vrot.lane.b32.xlu0 %v618, 1
      %v622 = vpop.permute.xlu0 %621
      %623 = vrot.lane.b32.xlu0 %v619, 1
      %v624 = vpop.permute.xlu0 %623
      %625 = vrot.lane.b32.xlu0 %v620, 1
      %v626 = vpop.permute.xlu0 %625
      %vm627 = vcmask 7168
      %v628 = vsel %vm627, %v622, %v624
      %v629 = vsel %vm627, %v624, %v626
      %v632 = vmul.f32 %v611, %v628
      %v633 = vmul.f32 %v611, %v629
      %v634 = vadd.f32 %v596, %v632
      %v635 = vadd.f32 %v597, %v633
      %v636 = vld [vmem:[#allocation2 + $0x4] sm:$0xff]
      %637 = vset.pattern.permute.xlu0 4
      %638 = vperm.xlu0 %637, %v476
      %v639 = vpop.permute.xlu0 %638
      %642 = vst [vmem:[#allocation1] ss:$2 sm:$0xff] %v636
      %v643 = vld.sshfl [vmem:[#allocation1] sm:$0xff pattern:$0x75316420]
      %v644 = vld.sshfl [vmem:[#allocation1 + $0x8] sm:$0xff pattern:$0x75316420]
      %v647 = vmul.f32 %v639, %v643
      %v648 = vmul.f32 %v639, %v644
      %v649 = vadd.f32 %v634, %v647
      %v650 = vadd.f32 %v635, %v648
      %v651 = vld [vmem:[#allocation2 + $0x4] sm:$0xff]
      %v652 = vld [vmem:[#allocation2 + $0xc] sm:$0xf]
      %653 = vrot.lane.b32.xlu0 %v561, 1
      %v654 = vpop.permute.xlu0 %653
      %v655 = vrot.slane %v654, 4
      %v656 = vsel %vm627, %v655, %v654
      %v659 = vmul.f32 %v651, %v656
      %v660 = vmul.f32 %v652, %v655
      %661 = vset.pattern.permute.xlu0 5
      %662 = vperm.xlu0 %661, %v476
      %v663 = vpop.permute.xlu0 %662
      %667 = vst [vmem:[#allocation1] ss:$2 sm:$0xff] %v659
      %s668 = scalar_lea.vmem [#allocation1], 16
      %669 = vst [vmem:[%s668] ss:$2 sm:$0xff] %v660
      %v670 = vld.sshfl [vmem:[#allocation1] sm:$0xff pattern:$0x75316420]
      %v671 = vld.sshfl [vmem:[#allocation1 + $0x8] sm:$0xff pattern:$0x75316420]
      %v672 = vld.sshfl [vmem:[#allocation1 + $0x10] sm:$0xff pattern:$0x75316420]
      %673 = vrot.lane.b32.xlu0 %v670, 127
      %v674 = vpop.permute.xlu0 %673
      %675 = vrot.lane.b32.xlu0 %v671, 127
      %v676 = vpop.permute.xlu0 %675
      %677 = vrot.lane.b32.xlu0 %v672, 127
      %v678 = vpop.permute.xlu0 %677
      %v679 = vsel %vm603, %v674, %v676
      %v680 = vsel %vm603, %v676, %v678
      %v683 = vmul.f32 %v663, %v679
      %v684 = vmul.f32 %v663, %v680
      %v685 = vadd.f32 %v649, %v683
      %v686 = vadd.f32 %v650, %v684
      %v687 = vld [vmem:[#allocation2 + $0x4] sm:$0xff]
      %v688 = vld [vmem:[#allocation2 + $0xc] sm:$0xf]
      %689 = vrot.lane.b32.xlu0 %v490, 15
      %v690 = vpop.permute.xlu0 %689
      %v691 = vrot.slane %v690, 4
      %v692 = vsel %vm589, %v691, %v690
      %v695 = vmul.f32 %v687, %v692
      %v696 = vmul.f32 %v688, %v691
      %697 = vset.pattern.permute.xlu0 6
      %698 = vperm.xlu0 %697, %v476
      %v699 = vpop.permute.xlu0 %698
      %703 = vst [vmem:[#allocation1] ss:$2 sm:$0xff] %v695
      %s704 = scalar_lea.vmem [#allocation1], 16
      %705 = vst [vmem:[%s704] ss:$2 sm:$0xff] %v696
      %v706 = vld.sshfl [vmem:[#allocation1] sm:$0xff pattern:$0x75316420]
      %v707 = vld.sshfl [vmem:[#allocation1 + $0x8] sm:$0xff pattern:$0x75316420]
      %v708 = vld.sshfl [vmem:[#allocation1 + $0x10] sm:$0xff pattern:$0x75316420]
      %709 = vrot.lane.b32.xlu0 %v706, 113
      %v710 = vpop.permute.xlu0 %709
      %711 = vrot.lane.b32.xlu0 %v707, 113
      %v712 = vpop.permute.xlu0 %711
      %713 = vrot.lane.b32.xlu0 %v708, 113
      %v714 = vpop.permute.xlu0 %713
      %v715 = vsel %vm565, %v710, %v712
      %v716 = vsel %vm565, %v712, %v714
      %v719 = vmul.f32 %v699, %v715
      %v720 = vmul.f32 %v699, %v716
      %v721 = vadd.f32 %v685, %v719
      %v722 = vadd.f32 %v686, %v720
      %v723 = vld [vmem:[#allocation2 + $0x4] sm:$0xff]
      %v724 = vld [vmem:[#allocation2 + $0xc] sm:$0xf]
      %725 = vset.pattern.permute.xlu0 7
      %726 = vperm.xlu0 %725, %v476
      %v727 = vpop.permute.xlu0 %726
      %731 = vst [vmem:[#allocation1] ss:$2 sm:$0xff] %v723
      %s732 = scalar_lea.vmem [#allocation1], 16
      %733 = vst [vmem:[%s732] ss:$2 sm:$0xff] %v724
      %v734 = vld.sshfl [vmem:[#allocation1] sm:$0xff pattern:$0x75316420]
      %v735 = vld.sshfl [vmem:[#allocation1 + $0x8] sm:$0xff pattern:$0x75316420]
      %v736 = vld.sshfl [vmem:[#allocation1 + $0x10] sm:$0xff pattern:$0x75316420]
      %737 = vrot.lane.b32.xlu0 %v734, 112
      %v738 = vpop.permute.xlu0 %737
      %739 = vrot.lane.b32.xlu0 %v735, 112
      %v740 = vpop.permute.xlu0 %739
      %741 = vrot.lane.b32.xlu0 %v736, 112
      %v742 = vpop.permute.xlu0 %741
      %vm743 = vcmask 916480
      %v744 = vsel %vm743, %v738, %v740
      %v745 = vsel %vm743, %v740, %v742
      %v748 = vmul.f32 %v727, %v744
      %v749 = vmul.f32 %v727, %v745
      %v750 = vadd.f32 %v721, %v748
      %v751 = vadd.f32 %v722, %v749
      %v752 = vld [vmem:[#allocation2 + $0x4] sm:$0xff]
      %v753 = vld [vmem:[#allocation2 + $0xc] sm:$0xf]
      %754 = vrot.lane.b32.xlu0 %v561, 17
      %v755 = vpop.permute.xlu0 %754
      %v756 = vrot.slane %v755, 4
      %v757 = vsel %vm519, %v756, %v755
      %v760 = vmul.f32 %v752, %v757
      %v761 = vmul.f32 %v753, %v756
      %762 = vset.pattern.permute.xlu0 8
      %763 = vperm.xlu0 %762, %v476
      %v764 = vpop.permute.xlu0 %763
      %768 = vst [vmem:[#allocation1] ss:$2 sm:$0xff] %v760
      %s769 = scalar_lea.vmem [#allocation1], 16
      %770 = vst [vmem:[%s769] ss:$2 sm:$0xff] %v761
      %v771 = vld.sshfl [vmem:[#allocation1] sm:$0xff pattern:$0x75316420]
      %v772 = vld.sshfl [vmem:[#allocation1 + $0x8] sm:$0xff pattern:$0x75316420]
      %v773 = vld.sshfl [vmem:[#allocation1 + $0x10] sm:$0xff pattern:$0x75316420]
      %774 = vrot.lane.b32.xlu0 %v771, 111
      %v775 = vpop.permute.xlu0 %774
      %776 = vrot.lane.b32.xlu0 %v772, 111
      %v777 = vpop.permute.xlu0 %776
      %778 = vrot.lane.b32.xlu0 %v773, 111
      %v779 = vpop.permute.xlu0 %778
      %v780 = vsel %vm494, %v775, %v777
      %v781 = vsel %vm494, %v777, %v779
      %v784 = vmul.f32 %v764, %v780
      %v785 = vmul.f32 %v764, %v781
      %v786 = vadd.f32 %v750, %v784
      %v787 = vadd.f32 %v751, %v785
      %788 = vset.pattern.permute.xlu0 1
      %789 = vperm.xlu0 %788, %v419
      %v790 = vpop.permute.xlu0 %789
      %v792 = vmul.f32 %v786, %v790
      %v793 = vmul.f32 %v787, %v790
      %794 = vset.pattern.permute.xlu0 2
      %795 = vperm.xlu0 %794, %v419
      %v796 = vpop.permute.xlu0 %795
      %v798 = vadd.f32 %v792, %v796
      %v799 = vadd.f32 %v793, %v796
      %v800 = vsel %vm480, %v798, 0.0
      %v801 = vsel %vm480, %v799, 0.0
      %v802 = vadd.f32 %v800, %v801
      %803 = vadd.xlane.f32.xlu0 %v802
      %v804 = vpop.xlane.xlu0 %803
      %v805 = vmul.f32 %v804, 0.00390625
      %v806 = vperm.slane %v805, 0
      %v807 = vmul.f32 %v416, %v806
      %v808 = vperm.slane %v805, 1
      %v809 = vmul.f32 %v416, %v808
      %811 = vrot.lane.b32.xlu0 %v809, 127
      %v812 = vpop.permute.xlu0 %811
      %v814 = vadd.f32 %v807, %v812
      %v815 = vperm.slane %v805, 2
      %v816 = vmul.f32 %v416, %v815
      %818 = vrot.lane.b32.xlu0 %v816, 126
      %v819 = vpop.permute.xlu0 %818
      %v821 = vadd.f32 %v814, %v819
      %v822 = vperm.slane %v805, 3
      %v823 = vmul.f32 %v416, %v822
      %825 = vrot.lane.b32.xlu0 %v823, 125
      %v826 = vpop.permute.xlu0 %825
      %v828 = vadd.f32 %v821, %v826
      %v829 = vmul.f32 %v828, 0.5
      %v830 = vtanh.pop %v829
      %v831 = vadd.f32 %v830, 1.0
      %v832 = vmul.f32 %v831, 0.5
      %834 = vset.pattern.permute.xlu0 0
      %835 = vperm.xlu0 %834, %v832
      %v836 = vpop.permute.xlu0 %835
      %v838 = vmul.f32 %v798, %v836
      %v839 = vmul.f32 %v799, %v836
      %v840 = vadd.f32 %v838, 3.0
      %v841 = vadd.f32 %v839, 3.0
      %v842 = vmax.f32 %v840, 0.0
      %v843 = vmax.f32 %v841, 0.0
      %v844 = vmin.f32 %v842, 6.0
      %v845 = vmin.f32 %v843, 6.0
      %v846 = vmul.f32 %v838, %v844
      %v847 = vmul.f32 %v839, %v845
      %v848 = vmul.f32 %v846, 0.16666667
      %v849 = vmul.f32 %v847, 0.16666667
      %851 = vset.pattern.permute.xlu0 0
      %852 = vperm.xlu0 %851, %v418
      %v853 = vpop.permute.xlu0 %852
      %v855 = vperm.slane %v848, 0
      %v856 = vperm.slane %v849, 0
      %v857 = vmul.f32 %v853, %v855
      %v858 = vmul.f32 %v853, %v856
      %859 = vset.pattern.permute.xlu0 3
      %860 = vperm.xlu0 %859, %v419
      %v861 = vpop.permute.xlu0 %860
      %v863 = vadd.f32 %v857, %v861
      %v864 = vadd.f32 %v858, %v861
      %865 = vset.pattern.permute.xlu0 1
      %866 = vperm.xlu0 %865, %v418
      %v867 = vpop.permute.xlu0 %866
      %v869 = vperm.slane %v848, 1
      %v870 = vperm.slane %v849, 1
      %v871 = vmul.f32 %v867, %v869
      %v872 = vmul.f32 %v867, %v870
      %v873 = vadd.f32 %v863, %v871
      %v874 = vadd.f32 %v864, %v872
      %875 = vset.pattern.permute.xlu0 2
      %876 = vperm.xlu0 %875, %v418
      %v877 = vpop.permute.xlu0 %876
      %v879 = vperm.slane %v848, 2
      %v880 = vperm.slane %v849, 2
      %v881 = vmul.f32 %v877, %v879
      %v882 = vmul.f32 %v877, %v880
      %v883 = vadd.f32 %v873, %v881
      %v884 = vadd.f32 %v874, %v882
      %885 = vset.pattern.permute.xlu0 3
      %886 = vperm.xlu0 %885, %v418
      %v887 = vpop.permute.xlu0 %886
      %v889 = vperm.slane %v848, 3
      %v890 = vperm.slane %v849, 3
      %v891 = vmul.f32 %v887, %v889
      %v892 = vmul.f32 %v887, %v890
      %v893 = vadd.f32 %v883, %v891
      %v894 = vadd.f32 %v884, %v892
      %v895 = vld [vmem:[%s7] sm:$0xff]
      %897 = vset.pattern.permute.xlu0 0
      %898 = vperm.xlu0 %897, %v895
      %v899 = vpop.permute.xlu0 %898
      %v901 = vperm.slane %v412, 0
      %v902 = vperm.slane %v413, 0
      %v903 = vmul.f32 %v899, %v901
      %v904 = vmul.f32 %v899, %v902
      %905 = vset.pattern.permute.xlu0 1
      %906 = vperm.xlu0 %905, %v895
      %v907 = vpop.permute.xlu0 %906
      %v909 = vperm.slane %v412, 1
      %v910 = vperm.slane %v413, 1
      %v911 = vmul.f32 %v907, %v909
      %v912 = vmul.f32 %v907, %v910
      %v913 = vadd.f32 %v903, %v911
      %v914 = vadd.f32 %v904, %v912
      %915 = vset.pattern.permute.xlu0 2
      %916 = vperm.xlu0 %915, %v895
      %v917 = vpop.permute.xlu0 %916
      %v919 = vperm.slane %v412, 2
      %v920 = vperm.slane %v413, 2
      %v921 = vmul.f32 %v917, %v919
      %v922 = vmul.f32 %v917, %v920
      %v923 = vadd.f32 %v913, %v921
      %v924 = vadd.f32 %v914, %v922
      %925 = vset.pattern.permute.xlu0 3
      %926 = vperm.xlu0 %925, %v895
      %v927 = vpop.permute.xlu0 %926
      %v929 = vperm.slane %v412, 3
      %v930 = vperm.slane %v413, 3
      %v931 = vmul.f32 %v927, %v929
      %v932 = vmul.f32 %v927, %v930
      %v933 = vadd.f32 %v923, %v931
      %v934 = vadd.f32 %v924, %v932
      %s935 = scalar_lea.vmem %s7, 8
      %v936 = vld [vmem:[%s935] sm:$0xff]
      %938 = vset.pattern.permute.xlu0 0
      %939 = vperm.xlu0 %938, %v936
      %v940 = vpop.permute.xlu0 %939
      %v942 = vmul.f32 %v940, %v425
      %v943 = vmul.f32 %v940, %v426
      %944 = vset.pattern.permute.xlu0 1
      %945 = vperm.xlu0 %944, %v936
      %v946 = vpop.permute.xlu0 %945
      %v948 = vmul.f32 %v946, %v440
      %v949 = vmul.f32 %v946, %v441
      %v950 = vadd.f32 %v942, %v948
      %v951 = vadd.f32 %v943, %v949
      %952 = vset.pattern.permute.xlu0 2
      %953 = vperm.xlu0 %952, %v936
      %v954 = vpop.permute.xlu0 %953
      %v956 = vmul.f32 %v954, %v450
      %v957 = vmul.f32 %v954, %v451
      %v958 = vadd.f32 %v950, %v956
      %v959 = vadd.f32 %v951, %v957
      %960 = vset.pattern.permute.xlu0 3
      %961 = vperm.xlu0 %960, %v936
      %v962 = vpop.permute.xlu0 %961
      %v964 = vmul.f32 %v962, %v460
      %v965 = vmul.f32 %v962, %v461
      %v966 = vadd.f32 %v958, %v964
      %v967 = vadd.f32 %v959, %v965
      %v968 = vadd.f32 %v933, %v966
      %v969 = vadd.f32 %v934, %v967
      %s970 = scalar_lea.vmem %s7, 16
      %v971 = vld [vmem:[%s970] sm:$0xff]
      %973 = vset.pattern.permute.xlu0 0
      %974 = vperm.xlu0 %973, %v971
      %v975 = vpop.permute.xlu0 %974
      %v977 = vperm.slane %v893, 0
      %v978 = vperm.slane %v894, 0
      %v979 = vmul.f32 %v975, %v977
      %v980 = vmul.f32 %v975, %v978
      %981 = vset.pattern.permute.xlu0 1
      %982 = vperm.xlu0 %981, %v971
      %v983 = vpop.permute.xlu0 %982
      %v985 = vperm.slane %v893, 1
      %v986 = vperm.slane %v894, 1
      %v987 = vmul.f32 %v983, %v985
      %v988 = vmul.f32 %v983, %v986
      %v989 = vadd.f32 %v979, %v987
      %v990 = vadd.f32 %v980, %v988
      %991 = vset.pattern.permute.xlu0 2
      %992 = vperm.xlu0 %991, %v971
      %v993 = vpop.permute.xlu0 %992
      %v995 = vperm.slane %v893, 2
      %v996 = vperm.slane %v894, 2
      %v997 = vmul.f32 %v993, %v995
      %v998 = vmul.f32 %v993, %v996
      %v999 = vadd.f32 %v989, %v997
      %v1000 = vadd.f32 %v990, %v998
      %1001 = vset.pattern.permute.xlu0 3
      %1002 = vperm.xlu0 %1001, %v971
      %v1003 = vpop.permute.xlu0 %1002
      %v1005 = vperm.slane %v893, 3
      %v1006 = vperm.slane %v894, 3
      %v1007 = vmul.f32 %v1003, %v1005
      %v1008 = vmul.f32 %v1003, %v1006
      %v1009 = vadd.f32 %v999, %v1007
      %v1010 = vadd.f32 %v1000, %v1008
      %v1011 = vadd.f32 %v968, %v1009
      %v1012 = vadd.f32 %v969, %v1010
      %v1013 = vld [vmem:[%s8] sm:$0xff]
      %1015 = vset.pattern.permute.xlu0 0
      %1016 = vperm.xlu0 %1015, %v1013
      %v1017 = vpop.permute.xlu0 %1016
      %v1019 = vadd.f32 %v1011, %v1017
      %v1020 = vadd.f32 %v1012, %v1017
      %v1021 = vmul.f32 %v1019, 0.5
      %v1022 = vmul.f32 %v1020, 0.5
      %v1023 = vtanh.pop %v1021
      %v1024 = vtanh.pop %v1022
      %v1025 = vadd.f32 %v1023, 1.0
      %v1026 = vadd.f32 %v1024, 1.0
      %v1027 = vmul.f32 %v1025, 0.5
      %v1028 = vmul.f32 %v1026, 0.5
      %v1029 = vmul.f32 %v1019, %v1027
      %v1030 = vmul.f32 %v1020, %v1028
      %1031 = vst [vmem:[%s332] sm:$0xff] %v1029
      %1032 = vst [vmem:[%s332 + $0x8] sm:$0xff] %v1030
      %p1033 = scmp.lt.s32.totalorder %s20, 1
      %s1034 = scalar_select %p1033, %s20, 1
      %s1035 = smul.addr %s1034, 2
      %s1036 = smul.addr %s1035, 8
      %s1037 = scalar_lea.vmem %s9, %s1036
      // Predicated region
      $region57: #{_lambda_.1} parent=55 // pred_check
        %p1038 = pneg %p232
      $region58: #{_lambda_.1} parent=55 // pred_check_branch
        %1040 = sbr.rel (%p1038) target = $region60
      $region59: #{_lambda_.1} parent=55 // pred_region
        _
      $region60: #{_lambda_.1} parent=55 // pred_fallthru
        _
    $region56: #{_lambda_.1} parent=5 // pred_fallthru
      _
    %p1041 = scmp.le.s32.totalorder 2, %s15
    // Predicated region
    $region61: #{_lambda_.1} parent=5 // pred_check
      %p1042 = pneg %p1041
    $region62: #{_lambda_.1} parent=5 // pred_check_branch
      %1044 = sbr.rel (%p1042) target = $region64
    $region63: #{_lambda_.1} parent=5 // pred_region
      %s1045 = ssub.s32 %s15, 2
      // Predicated region
      $region65: #{_lambda_.1} parent=63 // pred_check
        %p1046 = pneg %p238
      $region66: #{_lambda_.1} parent=63 // pred_check_branch
        %1048 = sbr.rel (%p1046) target = $region68
      $region67: #{_lambda_.1} parent=63 // pred_region
        %p1049 = scmp.lt.s32.totalorder %s21, 1
        %s1050 = scalar_select %p1049, %s21, 1
        %s1051 = smul.addr %s1050, 2
        %s1052 = smul.addr %s1051, 8
        %s1053 = scalar_lea.vmem %s9, %s1052
      $region68: #{_lambda_.1} parent=63 // pred_fallthru
        _
    $region64: #{_lambda_.1} parent=5 // pred_fallthru
      _
  $region6: #{_lambda_.1} parent=0 // loop_footer
    %s19 = sadd.s32 1, %s15
  $region7: #{_lambda_.1} parent=0 // loop_footer_branch
    %14 = sbr.rel target = $region3
  $region8: #{_lambda_.1} parent=0 // loop_exit
    _

</llo_original>
